<compile_context>
chip_gen: v7x
topology: tpu7x:2x2x1
jax: 0.10.0
libtpu: 0.0.40
codegen_flags: <defaults>
</compile_context>

<pallas_src>
import math

import jax
import jax.numpy as jnp
from jax.experimental import pallas as pl
from jax.experimental.pallas import tpu as pltpu


# ----------------------------------------------------------------------------
# Fused kernel.  One grid step = BB batch rows; everything stays on-chip.
# ----------------------------------------------------------------------------
def fused_kernel(x_ref,
                 m1_ref, b1_ref, m2_ref, b2_ref, m3_ref, b3_ref,
                 kb_ref, bk_ref, vb_ref, bv_ref, qm_ref, bq_ref,
                 sseg_ref, rt_ref, wha_ref, whp_ref, bfc_ref,
                 o_ref):
    f32 = jnp.float32
    cdt = m1_ref.dtype                      # MXU operand dtype (bf16 or f32)

    x = x_ref[...].astype(f32)              # (BB, L*Cin), lane-dense
    xc = x.astype(cdt)

    def mxdot(a, w_ref):                    # f32 accumulation on the MXU
        return jnp.dot(a, w_ref[...], preferred_element_type=f32)

    # ---- conv stack: 'same' conv + folded-BN + ReLU as one banded matmul ----
    h1 = jnp.maximum(mxdot(xc, m1_ref) + b1_ref[...], 0.0)        # (BB, L*F1)
    h2 = jnp.maximum(mxdot(h1.astype(cdt), m2_ref) + b2_ref[...], 0.0)
    h3 = jnp.maximum(mxdot(h2.astype(cdt), m3_ref) + b3_ref[...], 0.0)

    # ---- attention: per-position K/V (intermediate Linear folded in), -------
    # ---- query from the last position, already tiled across positions -------
    k = mxdot(xc, kb_ref) + bk_ref[...]                           # (BB, L*H)
    v = mxdot(xc, vb_ref) + bv_ref[...]                           # (BB, L*H)
    q = mxdot(xc, qm_ref) + bq_ref[...]                           # (BB, L*H)

    LH, L = sseg_ref.shape
    H = LH // L
    # segment-sum over H per position via an MXU contraction (no XLU reduce)
    scores = mxdot(q * k, sseg_ref) * (1.0 / math.sqrt(H))        # (BB, L)
    m = jnp.max(scores, axis=-1, keepdims=True)
    e = jnp.exp(scores - m)
    wgt = e * pl.reciprocal(jnp.sum(e, axis=-1, keepdims=True), approx=True)
    wgt_t = mxdot(wgt, rt_ref)                                    # (BB, L*H)

    # ---- head: attended @ wfc_attn + pooled @ wfc_pool + bias ---------------
    # (avg-pool and the "sum over positions" are folded into wha / whp)
    out = (mxdot((wgt_t * v).astype(cdt), wha_ref)
           + mxdot(h3.astype(cdt), whp_ref)
           + bfc_ref[...])                                        # (BB, Cpad)
    o_ref[...] = out.astype(o_ref.dtype)


# ----------------------------------------------------------------------------
# Wrapper: weight folding + banded-matrix construction + one pallas_call.
# ----------------------------------------------------------------------------
def _conv_band_matrix(w, L):
    """Banded matrix M (L*Cin, L*Cout) s.t. y_flat = x_flat @ M is the 'same'
    zero-padded 1-D conv (PyTorch padding='same').  w: (K, Cin, Cout)."""
    K, Cin, F = w.shape
    pad_l = (K - 1) // 2                    # PyTorch 'same' (extra pad on right)
    M = jnp.zeros((L * Cin, L * F), jnp.float32)
    for j in range(K):
        d = j - pad_l                       # input offset of tap j
        lo, hi = max(0, -d), min(L, L - d)
        if hi <= lo:
            continue
        blk = jnp.kron(jnp.eye(hi - lo, dtype=jnp.float32), w[j])
        M = M.at[(lo + d) * Cin:(hi + d) * Cin, lo * F:hi * F].add(blk)
    return M


def attention_os_cnn_forward(x, p, *, block_batch=None, use_bf16=True):
    B, L, Cin = x.shape
    H = p["wi"].shape[1]
    F3 = p["w3"].shape[-1]
    C = p["wfc"].shape[1]
    f32 = jnp.float32
    wdt = jnp.bfloat16 if use_bf16 else f32

    # ---- fold BatchNorm (inference) into conv weights / biases --------------
    def fold(w, b, s, t):
        return w * s[None, None, :], b * s + t

    w1, c1 = fold(p["w1"], p["b1"], p["s1"], p["t1"])
    w2, c2 = fold(p["w2"], p["b2"], p["s2"], p["t2"])
    w3, c3 = fold(p["w3"], p["b3"], p["s3"], p["t3"])

    m1, b1t = _conv_band_matrix(w1, L), jnp.tile(c1, L)[None, :]
    m2, b2t = _conv_band_matrix(w2, L), jnp.tile(c2, L)[None, :]
    m3, b3t = _conv_band_matrix(w3, L), jnp.tile(c3, L)[None, :]

    # ---- fold intermediate Linear into Q/K/V projections (exact) ------------
    wq_e, bq_e = p["wi"] @ p["wq"], p["bi"] @ p["wq"] + p["bq"]
    wk_e, bk_e = p["wi"] @ p["wk"], p["bi"] @ p["wk"] + p["bk"]
    wv_e, bv_e = p["wi"] @ p["wv"], p["bi"] @ p["wv"] + p["bv"]

    eyeL = jnp.eye(L, dtype=f32)
    kb = jnp.kron(eyeL, wk_e)                                   # (L*Cin, L*H)
    vb = jnp.kron(eyeL, wv_e)
    qm = jnp.zeros((L * Cin, L * H), f32)                       # last-pos query,
    qm = qm.at[(L - 1) * Cin:, :].set(jnp.tile(wq_e, (1, L)))   # tiled over L
    bkt = jnp.tile(bk_e, L)[None, :]
    bvt = jnp.tile(bv_e, L)[None, :]
    bqt = jnp.tile(bq_e, L)[None, :]

    # exact 0/1 segment / tile matrices (kept f32)
    sseg = jnp.kron(eyeL, jnp.ones((H, 1), f32))                # (L*H, L)
    rt = jnp.kron(eyeL, jnp.ones((1, H), f32))                  # (L, L*H)

    # ---- fold avg-pool and the attended/pooled split of fc into the head ----
    Cpad = ((C + 127) // 128) * 128                             # lane-dense out
    wfc_pad = jnp.pad(p["wfc"], ((0, 0), (0, Cpad - C)))
    bfc_pad = jnp.pad(p["bfc"], (0, Cpad - C))[None, :]
    wha = jnp.tile(wfc_pad[:H, :], (L, 1))                      # (L*H, Cpad)
    whp = jnp.tile(wfc_pad[H:, :], (L, 1)) / L                  # (L*F3, Cpad)

    # ---- batch blocking: big blocks (BB*L ~ 4K rows), "parallel" grid axis --
    x_flat = x.reshape(B, L * Cin).astype(f32)
    if block_batch is None:
        BB = max(8, min(512, 4096 // max(L, 1)))
        BB -= BB % 8
    else:
        BB = block_batch
    if B <= BB:
        BB, nblk, Bp = B, 1, B
    else:
        assert BB % 8 == 0, "block_batch must be a multiple of 8"
        nblk = pl.cdiv(B, BB)
        Bp = nblk * BB
        if Bp != B:
            x_flat = jnp.pad(x_flat, ((0, Bp - B), (0, 0)))

    consts = (m1.astype(wdt), b1t, m2.astype(wdt), b2t, m3.astype(wdt), b3t,
              kb.astype(wdt), bkt, vb.astype(wdt), bvt, qm.astype(wdt), bqt,
              sseg, rt,
              wha.astype(wdt), whp.astype(wdt), bfc_pad)
    const_specs = [pl.BlockSpec(a.shape, lambda b: (0, 0)) for a in consts]

    out = pl.pallas_call(
        fused_kernel,
        out_shape=jax.ShapeDtypeStruct((Bp, Cpad), f32),
        grid_spec=pltpu.PrefetchScalarGridSpec(
            num_scalar_prefetch=0,
            grid=(nblk,),
            in_specs=[pl.BlockSpec((BB, L * Cin), lambda b: (b, 0))]
                     + const_specs,
            out_specs=pl.BlockSpec((BB, Cpad), lambda b: (b, 0)),
        ),
        compiler_params=pltpu.CompilerParams(
            dimension_semantics=("parallel",)),
    )(x_flat, *consts)
    return out[:B, :C]


# ----------------------------------------------------------------------------
# Pure-JAX reference (for validation).
# ----------------------------------------------------------------------------
def reference_forward(x, p):
    def conv_bn_relu(h, w, b, s, t):
        k = w.shape[0]
        pad_l = (k - 1) // 2
        pad_r = (k - 1) - pad_l
        y = jax.lax.conv_general_dilated(
            h, w, window_strides=(1,), padding=[(pad_l, pad_r)],
            dimension_numbers=("NWC", "WIO", "NWC"))
        return jnp.maximum((y + b) * s + t, 0.0)

    h1 = conv_bn_relu(x, p["w1"], p["b1"], p["s1"], p["t1"])
    h2 = conv_bn_relu(h1, p["w2"], p["b2"], p["s2"], p["t2"])
    h3 = conv_bn_relu(h2, p["w3"], p["b3"], p["s3"], p["t3"])
    pooled = jnp.mean(h3, axis=1)                                   # (B, F3)

    H = p["wi"].shape[1]
    xt = jnp.einsum("blc,ch->blh", x, p["wi"]) + p["bi"]            # (B, L, H)
    q = jnp.einsum("blh,hk->blk", xt, p["wq"]) + p["bq"]
    k = jnp.einsum("blh,hk->blk", xt, p["wk"]) + p["bk"]
    v = jnp.einsum("blh,hk->blk", xt, p["wv"]) + p["bv"]
    scores = jnp.einsum("blh,bmh->blm", q, k) / math.sqrt(H)
    wgt = jax.nn.softmax(scores, axis=-1)
    attended = jnp.einsum("blm,bmh->blh", wgt, v)[:, -1, :]         # (B, H)

    combined = jnp.concatenate([attended, pooled], axis=1)
    return combined @ p["wfc"] + p["bfc"]


# ----------------------------------------------------------------------------
# Deterministic parameter init (synthetic — shapes follow the module __init__).
# ----------------------------------------------------------------------------
def init_params(key, input_size=1, cnn_filters=(8, 16, 8), hidden=32, num_classes=4):
    keys = iter(jax.random.split(key, 40))
    nrm = lambda shape, s=0.1: s * jax.random.normal(next(keys), shape, jnp.float32)
    f1, f2, f3 = cnn_filters
    eps = 1e-5
    p = {}
    # conv weights stored as (K, Cin, Cout)
    p["w1"], p["b1"] = nrm((8, input_size, f1)), nrm((f1,))
    p["w2"], p["b2"] = nrm((5, f1, f2)), nrm((f2,))
    p["w3"], p["b3"] = nrm((3, f2, f3)), nrm((f3,))
    # folded BatchNorm (inference): scale = gamma/sqrt(var+eps), shift = beta - mean*scale
    for i, f in zip((1, 2, 3), (f1, f2, f3)):
        gamma = 1.0 + nrm((f,))
        beta = nrm((f,))
        mean = nrm((f,))
        var = jnp.abs(nrm((f,))) + 1.0
        p[f"s{i}"] = gamma / jnp.sqrt(var + eps)
        p[f"t{i}"] = beta - mean * p[f"s{i}"]
    # intermediate Linear(input_size -> hidden), stored as (in, out)
    p["wi"], p["bi"] = nrm((input_size, hidden)), nrm((hidden,))
    # self-attention Q/K/V linears (hidden -> hidden)
    p["wq"], p["bq"] = nrm((hidden, hidden)), nrm((hidden,))
    p["wk"], p["bk"] = nrm((hidden, hidden)), nrm((hidden,))
    p["wv"], p["bv"] = nrm((hidden, hidden)), nrm((hidden,))
    # final fc: Linear(hidden + f3 -> num_classes), stored as (in, out)
    p["wfc"], p["bfc"] = nrm((hidden + f3, num_classes)), nrm((num_classes,))
    return p


if __name__ == "__main__":
    B, L, INPUT_SIZE = 2, 16, 1
    HIDDEN, FILTERS, NUM_CLASSES = 32, (8, 16, 8), 4

    key = jax.random.PRNGKey(0)
    kx, kx2, kp = jax.random.split(key, 3)
    x = jax.random.normal(kx, (B, L, INPUT_SIZE), jnp.float32)
    params = init_params(kp, INPUT_SIZE, FILTERS, HIDDEN, NUM_CLASSES)

    out = jax.block_until_ready(attention_os_cnn_forward(x, params))
    ref = jax.block_until_ready(reference_forward(x, params))
    assert out.shape == (B, NUM_CLASSES)
    assert jnp.allclose(out, ref, rtol=2e-2, atol=1e-2), (out, ref)

    # exercise the multi-block + batch-padding path (grid > 1)
    B2 = 20
    x2 = jax.random.normal(kx2, (B2, L, INPUT_SIZE), jnp.float32)
    out2 = jax.block_until_ready(
        attention_os_cnn_forward(x2, params, block_batch=16))
    ref2 = reference_forward(x2, params)
    assert out2.shape == (B2, NUM_CLASSES)
    assert jnp.allclose(out2, ref2, rtol=2e-2, atol=1e-2), (out2, ref2)

    print("KERNEL_OK")
</pallas_src>

<mosaic_0001>
module attributes {stable_mosaic.version = 11 : i64} {
  func.func @fused_kernel(%arg0: i32, %arg1: memref<2x16xf32, #tpu.memory_space<vmem>>, %arg2: memref<16x128xbf16, #tpu.memory_space<vmem>>, %arg3: memref<1x128xf32, #tpu.memory_space<vmem>>, %arg4: memref<128x256xbf16, #tpu.memory_space<vmem>>, %arg5: memref<1x256xf32, #tpu.memory_space<vmem>>, %arg6: memref<256x128xbf16, #tpu.memory_space<vmem>>, %arg7: memref<1x128xf32, #tpu.memory_space<vmem>>, %arg8: memref<16x512xbf16, #tpu.memory_space<vmem>>, %arg9: memref<1x512xf32, #tpu.memory_space<vmem>>, %arg10: memref<16x512xbf16, #tpu.memory_space<vmem>>, %arg11: memref<1x512xf32, #tpu.memory_space<vmem>>, %arg12: memref<16x512xbf16, #tpu.memory_space<vmem>>, %arg13: memref<1x512xf32, #tpu.memory_space<vmem>>, %arg14: memref<512x16xf32, #tpu.memory_space<vmem>>, %arg15: memref<16x512xf32, #tpu.memory_space<vmem>>, %arg16: memref<512x128xbf16, #tpu.memory_space<vmem>>, %arg17: memref<128x128xbf16, #tpu.memory_space<vmem>>, %arg18: memref<1x128xf32, #tpu.memory_space<vmem>>, %arg19: memref<2x128xf32, #tpu.memory_space<vmem>>) attributes {dimension_semantics = [#tpu.dimension_semantics<parallel>], iteration_bounds = array<i64: 1>, scalar_prefetch = 0 : i64, scratch_operands = 0 : i64, tpu.core_type = #tpu.core_type<tc>, window_params = [{transform_indices = @transform_0, window_bounds = array<i64: 2, 16>}, {pipeline_mode = #tpu.pipeline_mode<synchronous>, transform_indices = @transform_1, window_bounds = array<i64: 16, 128>}, {pipeline_mode = #tpu.pipeline_mode<synchronous>, transform_indices = @transform_2, window_bounds = array<i64: 1, 128>}, {pipeline_mode = #tpu.pipeline_mode<synchronous>, transform_indices = @transform_3, window_bounds = array<i64: 128, 256>}, {pipeline_mode = #tpu.pipeline_mode<synchronous>, transform_indices = @transform_4, window_bounds = array<i64: 1, 256>}, {pipeline_mode = #tpu.pipeline_mode<synchronous>, transform_indices = @transform_5, window_bounds = array<i64: 256, 128>}, {pipeline_mode = #tpu.pipeline_mode<synchronous>, transform_indices = @transform_6, window_bounds = array<i64: 1, 128>}, {pipeline_mode = #tpu.pipeline_mode<synchronous>, transform_indices = @transform_7, window_bounds = array<i64: 16, 512>}, {pipeline_mode = #tpu.pipeline_mode<synchronous>, transform_indices = @transform_8, window_bounds = array<i64: 1, 512>}, {pipeline_mode = #tpu.pipeline_mode<synchronous>, transform_indices = @transform_9, window_bounds = array<i64: 16, 512>}, {pipeline_mode = #tpu.pipeline_mode<synchronous>, transform_indices = @transform_10, window_bounds = array<i64: 1, 512>}, {pipeline_mode = #tpu.pipeline_mode<synchronous>, transform_indices = @transform_11, window_bounds = array<i64: 16, 512>}, {pipeline_mode = #tpu.pipeline_mode<synchronous>, transform_indices = @transform_12, window_bounds = array<i64: 1, 512>}, {pipeline_mode = #tpu.pipeline_mode<synchronous>, transform_indices = @transform_13, window_bounds = array<i64: 512, 16>}, {pipeline_mode = #tpu.pipeline_mode<synchronous>, transform_indices = @transform_14, window_bounds = array<i64: 16, 512>}, {pipeline_mode = #tpu.pipeline_mode<synchronous>, transform_indices = @transform_15, window_bounds = array<i64: 512, 128>}, {pipeline_mode = #tpu.pipeline_mode<synchronous>, transform_indices = @transform_16, window_bounds = array<i64: 128, 128>}, {pipeline_mode = #tpu.pipeline_mode<synchronous>, transform_indices = @transform_17, window_bounds = array<i64: 1, 128>}, {transform_indices = @transform_18, window_bounds = array<i64: 2, 128>}]} {
    %c0 = arith.constant 0 : index
    %c0_0 = arith.constant 0 : index
    %0 = vector.load %arg1[%c0, %c0_0] : memref<2x16xf32, #tpu.memory_space<vmem>>, vector<2x16xf32>
    %1 = arith.truncf %0 : vector<2x16xf32> to vector<2x16xbf16>
    %c0_1 = arith.constant 0 : index
    %c0_2 = arith.constant 0 : index
    %2 = vector.load %arg2[%c0_1, %c0_2] : memref<16x128xbf16, #tpu.memory_space<vmem>>, vector<16x128xbf16>
    %cst = arith.constant dense<0.000000e+00> : vector<2x128xf32>
    %3 = tpu.matmul %1, %2, %cst {dimension_numbers = #tpu.dot_dimension_numbers<[1], [0], [0], [1], [0, 0, 1, 1], [], []>} : vector<2x16xbf16>, vector<16x128xbf16>, vector<2x128xf32> -> vector<2x128xf32>
    %c0_3 = arith.constant 0 : index
    %c0_4 = arith.constant 0 : index
    %4 = vector.load %arg3[%c0_3, %c0_4] : memref<1x128xf32, #tpu.memory_space<vmem>>, vector<1x128xf32>
    %5 = vector.broadcast %4 : vector<1x128xf32> to vector<2x128xf32>
    %6 = arith.addf %3, %5 : vector<2x128xf32>
    %cst_5 = arith.constant 0.000000e+00 : f32
    %7 = vector.broadcast %cst_5 : f32 to vector<2x128xf32>
    %8 = arith.maximumf %6, %7 : vector<2x128xf32>
    %9 = arith.truncf %8 : vector<2x128xf32> to vector<2x128xbf16>
    %c0_6 = arith.constant 0 : index
    %c0_7 = arith.constant 0 : index
    %10 = vector.load %arg4[%c0_6, %c0_7] : memref<128x256xbf16, #tpu.memory_space<vmem>>, vector<128x256xbf16>
    %cst_8 = arith.constant dense<0.000000e+00> : vector<2x256xf32>
    %11 = tpu.matmul %9, %10, %cst_8 {dimension_numbers = #tpu.dot_dimension_numbers<[1], [0], [0], [1], [0, 0, 1, 1], [], []>} : vector<2x128xbf16>, vector<128x256xbf16>, vector<2x256xf32> -> vector<2x256xf32>
    %c0_9 = arith.constant 0 : index
    %c0_10 = arith.constant 0 : index
    %12 = vector.load %arg5[%c0_9, %c0_10] : memref<1x256xf32, #tpu.memory_space<vmem>>, vector<1x256xf32>
    %13 = vector.broadcast %12 : vector<1x256xf32> to vector<2x256xf32>
    %14 = arith.addf %11, %13 : vector<2x256xf32>
    %cst_11 = arith.constant 0.000000e+00 : f32
    %15 = vector.broadcast %cst_11 : f32 to vector<2x256xf32>
    %16 = arith.maximumf %14, %15 : vector<2x256xf32>
    %17 = arith.truncf %16 : vector<2x256xf32> to vector<2x256xbf16>
    %c0_12 = arith.constant 0 : index
    %c0_13 = arith.constant 0 : index
    %18 = vector.load %arg6[%c0_12, %c0_13] : memref<256x128xbf16, #tpu.memory_space<vmem>>, vector<256x128xbf16>
    %cst_14 = arith.constant dense<0.000000e+00> : vector<2x128xf32>
    %19 = tpu.matmul %17, %18, %cst_14 {dimension_numbers = #tpu.dot_dimension_numbers<[1], [0], [0], [1], [0, 0, 1, 1], [], []>} : vector<2x256xbf16>, vector<256x128xbf16>, vector<2x128xf32> -> vector<2x128xf32>
    %c0_15 = arith.constant 0 : index
    %c0_16 = arith.constant 0 : index
    %20 = vector.load %arg7[%c0_15, %c0_16] : memref<1x128xf32, #tpu.memory_space<vmem>>, vector<1x128xf32>
    %21 = vector.broadcast %20 : vector<1x128xf32> to vector<2x128xf32>
    %22 = arith.addf %19, %21 : vector<2x128xf32>
    %cst_17 = arith.constant 0.000000e+00 : f32
    %23 = vector.broadcast %cst_17 : f32 to vector<2x128xf32>
    %24 = arith.maximumf %22, %23 : vector<2x128xf32>
    %c0_18 = arith.constant 0 : index
    %c0_19 = arith.constant 0 : index
    %25 = vector.load %arg8[%c0_18, %c0_19] : memref<16x512xbf16, #tpu.memory_space<vmem>>, vector<16x512xbf16>
    %cst_20 = arith.constant dense<0.000000e+00> : vector<2x512xf32>
    %26 = tpu.matmul %1, %25, %cst_20 {dimension_numbers = #tpu.dot_dimension_numbers<[1], [0], [0], [1], [0, 0, 1, 1], [], []>} : vector<2x16xbf16>, vector<16x512xbf16>, vector<2x512xf32> -> vector<2x512xf32>
    %c0_21 = arith.constant 0 : index
    %c0_22 = arith.constant 0 : index
    %27 = vector.load %arg9[%c0_21, %c0_22] : memref<1x512xf32, #tpu.memory_space<vmem>>, vector<1x512xf32>
    %28 = vector.broadcast %27 : vector<1x512xf32> to vector<2x512xf32>
    %29 = arith.addf %26, %28 : vector<2x512xf32>
    %c0_23 = arith.constant 0 : index
    %c0_24 = arith.constant 0 : index
    %30 = vector.load %arg10[%c0_23, %c0_24] : memref<16x512xbf16, #tpu.memory_space<vmem>>, vector<16x512xbf16>
    %cst_25 = arith.constant dense<0.000000e+00> : vector<2x512xf32>
    %31 = tpu.matmul %1, %30, %cst_25 {dimension_numbers = #tpu.dot_dimension_numbers<[1], [0], [0], [1], [0, 0, 1, 1], [], []>} : vector<2x16xbf16>, vector<16x512xbf16>, vector<2x512xf32> -> vector<2x512xf32>
    %c0_26 = arith.constant 0 : index
    %c0_27 = arith.constant 0 : index
    %32 = vector.load %arg11[%c0_26, %c0_27] : memref<1x512xf32, #tpu.memory_space<vmem>>, vector<1x512xf32>
    %33 = vector.broadcast %32 : vector<1x512xf32> to vector<2x512xf32>
    %34 = arith.addf %31, %33 : vector<2x512xf32>
    %c0_28 = arith.constant 0 : index
    %c0_29 = arith.constant 0 : index
    %35 = vector.load %arg12[%c0_28, %c0_29] : memref<16x512xbf16, #tpu.memory_space<vmem>>, vector<16x512xbf16>
    %cst_30 = arith.constant dense<0.000000e+00> : vector<2x512xf32>
    %36 = tpu.matmul %1, %35, %cst_30 {dimension_numbers = #tpu.dot_dimension_numbers<[1], [0], [0], [1], [0, 0, 1, 1], [], []>} : vector<2x16xbf16>, vector<16x512xbf16>, vector<2x512xf32> -> vector<2x512xf32>
    %c0_31 = arith.constant 0 : index
    %c0_32 = arith.constant 0 : index
    %37 = vector.load %arg13[%c0_31, %c0_32] : memref<1x512xf32, #tpu.memory_space<vmem>>, vector<1x512xf32>
    %38 = vector.broadcast %37 : vector<1x512xf32> to vector<2x512xf32>
    %39 = arith.addf %36, %38 : vector<2x512xf32>
    %40 = arith.mulf %39, %29 : vector<2x512xf32>
    %c0_33 = arith.constant 0 : index
    %c0_34 = arith.constant 0 : index
    %41 = vector.load %arg14[%c0_33, %c0_34] : memref<512x16xf32, #tpu.memory_space<vmem>>, vector<512x16xf32>
    %cst_35 = arith.constant dense<0.000000e+00> : vector<2x16xf32>
    %42 = tpu.matmul %40, %41, %cst_35 {dimension_numbers = #tpu.dot_dimension_numbers<[1], [0], [0], [1], [0, 0, 1, 1], [], []>} : vector<2x512xf32>, vector<512x16xf32>, vector<2x16xf32> -> vector<2x16xf32>
    %cst_36 = arith.constant 0.176776692 : f32
    %43 = vector.broadcast %cst_36 : f32 to vector<2x16xf32>
    %44 = arith.mulf %42, %43 : vector<2x16xf32>
    %cst_37 = arith.constant dense<0xFF800000> : vector<2xf32>
    %45 = vector.multi_reduction <maximumf>, %44, %cst_37 [1] : vector<2x16xf32> to vector<2xf32>
    %46 = vector.shape_cast %45 : vector<2xf32> to vector<2x1xf32>
    %47 = vector.broadcast %46 : vector<2x1xf32> to vector<2x16xf32>
    %48 = arith.subf %44, %47 : vector<2x16xf32>
    %49 = math.exp %48 : vector<2x16xf32>
    %cst_38 = arith.constant dense<0.000000e+00> : vector<2xf32>
    %50 = vector.multi_reduction <add>, %49, %cst_38 [1] : vector<2x16xf32> to vector<2xf32>
    %51 = vector.shape_cast %50 : vector<2xf32> to vector<2x1xf32>
    %52 = tpu.reciprocal %51 {approx = true} : vector<2x1xf32> -> vector<2x1xf32>
    %53 = vector.broadcast %52 : vector<2x1xf32> to vector<2x16xf32>
    %54 = arith.mulf %49, %53 : vector<2x16xf32>
    %c0_39 = arith.constant 0 : index
    %c0_40 = arith.constant 0 : index
    %55 = vector.load %arg15[%c0_39, %c0_40] : memref<16x512xf32, #tpu.memory_space<vmem>>, vector<16x512xf32>
    %cst_41 = arith.constant dense<0.000000e+00> : vector<2x512xf32>
    %56 = tpu.matmul %54, %55, %cst_41 {dimension_numbers = #tpu.dot_dimension_numbers<[1], [0], [0], [1], [0, 0, 1, 1], [], []>} : vector<2x16xf32>, vector<16x512xf32>, vector<2x512xf32> -> vector<2x512xf32>
    %57 = arith.mulf %56, %34 : vector<2x512xf32>
    %58 = arith.truncf %57 : vector<2x512xf32> to vector<2x512xbf16>
    %c0_42 = arith.constant 0 : index
    %c0_43 = arith.constant 0 : index
    %59 = vector.load %arg16[%c0_42, %c0_43] : memref<512x128xbf16, #tpu.memory_space<vmem>>, vector<512x128xbf16>
    %cst_44 = arith.constant dense<0.000000e+00> : vector<2x128xf32>
    %60 = tpu.matmul %58, %59, %cst_44 {dimension_numbers = #tpu.dot_dimension_numbers<[1], [0], [0], [1], [0, 0, 1, 1], [], []>} : vector<2x512xbf16>, vector<512x128xbf16>, vector<2x128xf32> -> vector<2x128xf32>
    %61 = arith.truncf %24 : vector<2x128xf32> to vector<2x128xbf16>
    %c0_45 = arith.constant 0 : index
    %c0_46 = arith.constant 0 : index
    %62 = vector.load %arg17[%c0_45, %c0_46] : memref<128x128xbf16, #tpu.memory_space<vmem>>, vector<128x128xbf16>
    %cst_47 = arith.constant dense<0.000000e+00> : vector<2x128xf32>
    %63 = tpu.matmul %61, %62, %cst_47 {dimension_numbers = #tpu.dot_dimension_numbers<[1], [0], [0], [1], [0, 0, 1, 1], [], []>} : vector<2x128xbf16>, vector<128x128xbf16>, vector<2x128xf32> -> vector<2x128xf32>
    %64 = arith.addf %60, %63 : vector<2x128xf32>
    %c0_48 = arith.constant 0 : index
    %c0_49 = arith.constant 0 : index
    %65 = vector.load %arg18[%c0_48, %c0_49] : memref<1x128xf32, #tpu.memory_space<vmem>>, vector<1x128xf32>
    %66 = vector.broadcast %65 : vector<1x128xf32> to vector<2x128xf32>
    %67 = arith.addf %64, %66 : vector<2x128xf32>
    %c0_50 = arith.constant 0 : index
    %c0_51 = arith.constant 0 : index
    %68 = vector.load %arg19[%c0_50, %c0_51] : memref<2x128xf32, #tpu.memory_space<vmem>>, vector<2x128xf32>
    tpu.vector_store %arg19[%c0_50, %c0_51], %67 {strides = array<i32>} : memref<2x128xf32, #tpu.memory_space<vmem>>, vector<2x128xf32>,
    return
  }
  func.func @transform_0(%arg0: i32) -> (i32, i32) {
    %c0_i32 = arith.constant 0 : i32
    %c0_i32_0 = arith.constant 0 : i32
    return %arg0, %c0_i32 : i32, i32
  }
  func.func @transform_1(%arg0: i32) -> (i32, i32) {
    %c0_i32 = arith.constant 0 : i32
    %c0_i32_0 = arith.constant 0 : i32
    %c0_i32_1 = arith.constant 0 : i32
    return %c0_i32, %c0_i32_0 : i32, i32
  }
  func.func @transform_2(%arg0: i32) -> (i32, i32) {
    %c0_i32 = arith.constant 0 : i32
    %c0_i32_0 = arith.constant 0 : i32
    %c0_i32_1 = arith.constant 0 : i32
    return %c0_i32, %c0_i32_0 : i32, i32
  }
  func.func @transform_3(%arg0: i32) -> (i32, i32) {
    %c0_i32 = arith.constant 0 : i32
    %c0_i32_0 = arith.constant 0 : i32
    %c0_i32_1 = arith.constant 0 : i32
    return %c0_i32, %c0_i32_0 : i32, i32
  }
  func.func @transform_4(%arg0: i32) -> (i32, i32) {
    %c0_i32 = arith.constant 0 : i32
    %c0_i32_0 = arith.constant 0 : i32
    %c0_i32_1 = arith.constant 0 : i32
    return %c0_i32, %c0_i32_0 : i32, i32
  }
  func.func @transform_5(%arg0: i32) -> (i32, i32) {
    %c0_i32 = arith.constant 0 : i32
    %c0_i32_0 = arith.constant 0 : i32
    %c0_i32_1 = arith.constant 0 : i32
    return %c0_i32, %c0_i32_0 : i32, i32
  }
  func.func @transform_6(%arg0: i32) -> (i32, i32) {
    %c0_i32 = arith.constant 0 : i32
    %c0_i32_0 = arith.constant 0 : i32
    %c0_i32_1 = arith.constant 0 : i32
    return %c0_i32, %c0_i32_0 : i32, i32
  }
  func.func @transform_7(%arg0: i32) -> (i32, i32) {
    %c0_i32 = arith.constant 0 : i32
    %c0_i32_0 = arith.constant 0 : i32
    %c0_i32_1 = arith.constant 0 : i32
    return %c0_i32, %c0_i32_0 : i32, i32
  }
  func.func @transform_8(%arg0: i32) -> (i32, i32) {
    %c0_i32 = arith.constant 0 : i32
    %c0_i32_0 = arith.constant 0 : i32
    %c0_i32_1 = arith.constant 0 : i32
    return %c0_i32, %c0_i32_0 : i32, i32
  }
  func.func @transform_9(%arg0: i32) -> (i32, i32) {
    %c0_i32 = arith.constant 0 : i32
    %c0_i32_0 = arith.constant 0 : i32
    %c0_i32_1 = arith.constant 0 : i32
    return %c0_i32, %c0_i32_0 : i32, i32
  }
  func.func @transform_10(%arg0: i32) -> (i32, i32) {
    %c0_i32 = arith.constant 0 : i32
    %c0_i32_0 = arith.constant 0 : i32
    %c0_i32_1 = arith.constant 0 : i32
    return %c0_i32, %c0_i32_0 : i32, i32
  }
  func.func @transform_11(%arg0: i32) -> (i32, i32) {
    %c0_i32 = arith.constant 0 : i32
    %c0_i32_0 = arith.constant 0 : i32
    %c0_i32_1 = arith.constant 0 : i32
    return %c0_i32, %c0_i32_0 : i32, i32
  }
  func.func @transform_12(%arg0: i32) -> (i32, i32) {
    %c0_i32 = arith.constant 0 : i32
    %c0_i32_0 = arith.constant 0 : i32
    %c0_i32_1 = arith.constant 0 : i32
    return %c0_i32, %c0_i32_0 : i32, i32
  }
  func.func @transform_13(%arg0: i32) -> (i32, i32) {
    %c0_i32 = arith.constant 0 : i32
    %c0_i32_0 = arith.constant 0 : i32
    %c0_i32_1 = arith.constant 0 : i32
    return %c0_i32, %c0_i32_0 : i32, i32
  }
  func.func @transform_14(%arg0: i32) -> (i32, i32) {
    %c0_i32 = arith.constant 0 : i32
    %c0_i32_0 = arith.constant 0 : i32
    %c0_i32_1 = arith.constant 0 : i32
    return %c0_i32, %c0_i32_0 : i32, i32
  }
  func.func @transform_15(%arg0: i32) -> (i32, i32) {
    %c0_i32 = arith.constant 0 : i32
    %c0_i32_0 = arith.constant 0 : i32
    %c0_i32_1 = arith.constant 0 : i32
    return %c0_i32, %c0_i32_0 : i32, i32
  }
  func.func @transform_16(%arg0: i32) -> (i32, i32) {
    %c0_i32 = arith.constant 0 : i32
    %c0_i32_0 = arith.constant 0 : i32
    %c0_i32_1 = arith.constant 0 : i32
    return %c0_i32, %c0_i32_0 : i32, i32
  }
  func.func @transform_17(%arg0: i32) -> (i32, i32) {
    %c0_i32 = arith.constant 0 : i32
    %c0_i32_0 = arith.constant 0 : i32
    %c0_i32_1 = arith.constant 0 : i32
    return %c0_i32, %c0_i32_0 : i32, i32
  }
  func.func @transform_18(%arg0: i32) -> (i32, i32) {
    %c0_i32 = arith.constant 0 : i32
    %c0_i32_0 = arith.constant 0 : i32
    return %arg0, %c0_i32 : i32, i32
  }
}

</mosaic_0001>

<llo_original>
// kernel: tpu_custom_call.1
$region0: #{tpu_custom_call.1}
  #allocation0 [shape = 'u32[]', space=smem, size = 0x4, offset = 0x4, fixed_abs, tag = 'smem constant byte address 0x4 - core index']
  #allocation1 [shape = 'u32[144,128]{1,0:T(1,128)}', space=vmem, size = 0x12000, scoped, tag = 'internal scratch']
  %s0 = inlined_call_operand.hbm [shape: f32[2,16], index: 0, kind: input, shape index: {}]
  %s1 = inlined_call_operand.hbm [shape: bf16[16,128], index: 1, kind: input, shape index: {}]
  %s2 = inlined_call_operand.vmem [shape: f32[1,128], index: 2, kind: input, shape index: {}]
  %s3 = inlined_call_operand.vmem [shape: bf16[128,256], index: 3, kind: input, shape index: {}]
  %s4 = inlined_call_operand.hbm [shape: f32[1,256], index: 4, kind: input, shape index: {}]
  %s5 = inlined_call_operand.vmem [shape: bf16[256,128], index: 5, kind: input, shape index: {}]
  %s6 = inlined_call_operand.hbm [shape: f32[1,128], index: 6, kind: input, shape index: {}]
  %s7 = inlined_call_operand.hbm [shape: bf16[16,512], index: 7, kind: input, shape index: {}]
  %s8 = inlined_call_operand.vmem [shape: f32[1,512], index: 8, kind: input, shape index: {}]
  %s9 = inlined_call_operand.hbm [shape: bf16[16,512], index: 9, kind: input, shape index: {}]
  %s10 = inlined_call_operand.hbm [shape: f32[1,512], index: 10, kind: input, shape index: {}]
  %s11 = inlined_call_operand.vmem [shape: bf16[16,512], index: 11, kind: input, shape index: {}]
  %s12 = inlined_call_operand.vmem [shape: f32[1,512], index: 12, kind: input, shape index: {}]
  %s13 = inlined_call_operand.vmem [shape: f32[512,16], index: 13, kind: input, shape index: {}]
  %s14 = inlined_call_operand.vmem [shape: f32[16,512], index: 14, kind: input, shape index: {}]
  %s15 = inlined_call_operand.vmem [shape: bf16[512,128], index: 15, kind: input, shape index: {}]
  %s16 = inlined_call_operand.hbm [shape: bf16[128,128], index: 16, kind: input, shape index: {}]
  %s17 = inlined_call_operand.vmem [shape: f32[1,128], index: 17, kind: input, shape index: {}]
  %s18 = inlined_call_operand.hbm [shape: f32[2,128], index: 18, kind: output, shape index: {}]
  %s19 = sld [smem:[#allocation0]]
  $region114: #{tpu_custom_call.1} parent=0
    _
  %s21 = ssub.s32 1, %s19
  %s22 = scalar_select 0, %s21, %s19
  $region1: #{tpu_custom_call.1} parent=0
    #allocation2 [shape = 'u8[1024]{0}', space=vmem, size = 0x400, scoped, tag = 'input window, operand 0, single buffered']
    #allocation3 [shape = 's32[1]{0}', space=sflag, size = 0x4, scoped, tag = 'scoped memory for tpu_custom_call.1']
    #allocation4 [shape = 's32[1]{0}', space=sflag, size = 0x4, scoped, tag = 'scoped memory for tpu_custom_call.1']
    #allocation5 [shape = 'u8[4096]{0}', space=vmem, size = 0x1000, scoped, tag = 'input window, operand 1, single buffered']
    #allocation6 [shape = 's32[1]{0}', space=sflag, size = 0x4, scoped, tag = 'scoped memory for tpu_custom_call.1']
    #allocation7 [shape = 'u8[1024]{0}', space=vmem, size = 0x400, scoped, tag = 'input window, operand 4, single buffered']
    #allocation8 [shape = 'u8[512]{0}', space=vmem, size = 0x400, scoped, tag = 'input window, operand 6, single buffered']
    #allocation9 [shape = 's32[1]{0}', space=sflag, size = 0x4, scoped, tag = 'scoped memory for tpu_custom_call.1']
    #allocation10 [shape = 'u8[16384]{0}', space=vmem, size = 0x4000, scoped, tag = 'input window, operand 7, single buffered']
    #allocation11 [shape = 'u8[16384]{0}', space=vmem, size = 0x4000, scoped, tag = 'input window, operand 9, single buffered']
    #allocation12 [shape = 's32[1]{0}', space=sflag, size = 0x4, scoped, tag = 'scoped memory for tpu_custom_call.1']
    #allocation13 [shape = 'u8[2048]{0}', space=vmem, size = 0x800, scoped, tag = 'input window, operand 10, single buffered']
    #allocation14 [shape = 'u8[32768]{0}', space=vmem, size = 0x8000, scoped, tag = 'input window, operand 16, single buffered']
    #allocation15 [shape = 's32[1]{0}', space=sflag, size = 0x4, scoped, tag = 'scoped memory for tpu_custom_call.1']
    #allocation16 [shape = 'u8[1024]{0}', space=vmem, size = 0x400, scoped, tag = 'output window, operand 0, single buffered']
    %23 = vsyncpa [#allocation3], 0
    %24 = vsyncpa [#allocation6], 0
    %25 = vsyncpa [#allocation9], 0
    %26 = vsyncpa [#allocation12], 0
    %27 = vsyncpa [#allocation15], 0
    %28 = vsyncpa [#allocation4], 0
    // Predicated region
    $region2: #{tpu_custom_call.1} parent=1 // pred_check
      _
    $region3: #{tpu_custom_call.1} parent=1 // pred_check_branch
      %30 = sbr.rel (0) target = $region5
    $region4: #{tpu_custom_call.1} parent=1 // pred_region
      %s32 = ssub.s32 32, 32
      %33 = vsyncadd [#allocation3], %s32
      %s35 = sshll.u32 [#allocation2], 4
      %s36 = int_to_ptr.vmem [resolvable:$true] %s35
      %38 = dma.hbm_to_vmem [thread:$0]  %s0, 32, %s36, [#allocation3]
    $region5: #{tpu_custom_call.1} parent=1 // pred_fallthru
      _
    // Predicated region
    $region6: #{tpu_custom_call.1} parent=1 // pred_check
      _
    $region7: #{tpu_custom_call.1} parent=1 // pred_check_branch
      %40 = sbr.rel (0) target = $region9
    $region8: #{tpu_custom_call.1} parent=1 // pred_region
      %s42 = ssub.s32 128, 128
      %43 = vsyncadd [#allocation6], %s42
      %s44 = sshll.u32 [#allocation5], 4
      %s45 = int_to_ptr.vmem [resolvable:$true] %s44
      %50 = dma.hbm_to_vmem [thread:$0]  %s1, 128, %s45, [#allocation6], 64, 64, 4
    $region9: #{tpu_custom_call.1} parent=1 // pred_fallthru
      _
    // Predicated region
    $region10: #{tpu_custom_call.1} parent=1 // pred_check
      _
    $region11: #{tpu_custom_call.1} parent=1 // pred_check_branch
      %52 = sbr.rel (0) target = $region13
    $region12: #{tpu_custom_call.1} parent=1 // pred_region
      _
    $region13: #{tpu_custom_call.1} parent=1 // pred_fallthru
      _
    // Predicated region
    $region14: #{tpu_custom_call.1} parent=1 // pred_check
      _
    $region15: #{tpu_custom_call.1} parent=1 // pred_check_branch
      %54 = sbr.rel (0) target = $region17
    $region16: #{tpu_custom_call.1} parent=1 // pred_region
      _
    $region17: #{tpu_custom_call.1} parent=1 // pred_fallthru
      _
    // Predicated region
    $region18: #{tpu_custom_call.1} parent=1 // pred_check
      _
    $region19: #{tpu_custom_call.1} parent=1 // pred_check_branch
      %56 = sbr.rel (0) target = $region21
    $region20: #{tpu_custom_call.1} parent=1 // pred_region
      %s58 = ssub.s32 32, 32
      %59 = vsyncadd [#allocation6], %s58
      %s61 = sshll.u32 [#allocation7], 4
      %s62 = int_to_ptr.vmem [resolvable:$true] %s61
      %64 = dma.hbm_to_vmem [thread:$0]  %s4, 32, %s62, [#allocation6]
    $region21: #{tpu_custom_call.1} parent=1 // pred_fallthru
      _
    // Predicated region
    $region22: #{tpu_custom_call.1} parent=1 // pred_check
      _
    $region23: #{tpu_custom_call.1} parent=1 // pred_check_branch
      %66 = sbr.rel (0) target = $region25
    $region24: #{tpu_custom_call.1} parent=1 // pred_region
      _
    $region25: #{tpu_custom_call.1} parent=1 // pred_fallthru
      _
    // Predicated region
    $region26: #{tpu_custom_call.1} parent=1 // pred_check
      _
    $region27: #{tpu_custom_call.1} parent=1 // pred_check_branch
      %68 = sbr.rel (0) target = $region29
    $region28: #{tpu_custom_call.1} parent=1 // pred_region
      %s70 = ssub.s32 16, 16
      %71 = vsyncadd [#allocation9], %s70
      %s73 = sshll.u32 [#allocation8], 4
      %s74 = int_to_ptr.vmem [resolvable:$true] %s73
      %76 = dma.hbm_to_vmem [thread:$0]  %s6, 16, %s74, [#allocation9]
    $region29: #{tpu_custom_call.1} parent=1 // pred_fallthru
      _
    // Predicated region
    $region30: #{tpu_custom_call.1} parent=1 // pred_check
      _
    $region31: #{tpu_custom_call.1} parent=1 // pred_check_branch
      %78 = sbr.rel (0) target = $region33
    $region32: #{tpu_custom_call.1} parent=1 // pred_region
      %s80 = ssub.s32 512, 512
      %81 = vsyncadd [#allocation9], %s80
      %s82 = sshll.u32 [#allocation10], 4
      %s83 = int_to_ptr.vmem [resolvable:$true] %s82
      %88 = dma.hbm_to_vmem [thread:$0]  %s7, 512, %s83, [#allocation9], 256, 256, 16
    $region33: #{tpu_custom_call.1} parent=1 // pred_fallthru
      _
    // Predicated region
    $region34: #{tpu_custom_call.1} parent=1 // pred_check
      _
    $region35: #{tpu_custom_call.1} parent=1 // pred_check_branch
      %90 = sbr.rel (0) target = $region37
    $region36: #{tpu_custom_call.1} parent=1 // pred_region
      _
    $region37: #{tpu_custom_call.1} parent=1 // pred_fallthru
      _
    // Predicated region
    $region38: #{tpu_custom_call.1} parent=1 // pred_check
      _
    $region39: #{tpu_custom_call.1} parent=1 // pred_check_branch
      %92 = sbr.rel (0) target = $region41
    $region40: #{tpu_custom_call.1} parent=1 // pred_region
      %s94 = ssub.s32 512, 512
      %95 = vsyncadd [#allocation12], %s94
      %s96 = sshll.u32 [#allocation11], 4
      %s97 = int_to_ptr.vmem [resolvable:$true] %s96
      %102 = dma.hbm_to_vmem [thread:$0]  %s9, 512, %s97, [#allocation12], 256, 256, 16
    $region41: #{tpu_custom_call.1} parent=1 // pred_fallthru
      _
    // Predicated region
    $region42: #{tpu_custom_call.1} parent=1 // pred_check
      _
    $region43: #{tpu_custom_call.1} parent=1 // pred_check_branch
      %104 = sbr.rel (0) target = $region45
    $region44: #{tpu_custom_call.1} parent=1 // pred_region
      %s106 = ssub.s32 64, 64
      %107 = vsyncadd [#allocation12], %s106
      %s109 = sshll.u32 [#allocation13], 4
      %s110 = int_to_ptr.vmem [resolvable:$true] %s109
      %112 = dma.hbm_to_vmem [thread:$0]  %s10, 64, %s110, [#allocation12]
    $region45: #{tpu_custom_call.1} parent=1 // pred_fallthru
      _
    // Predicated region
    $region46: #{tpu_custom_call.1} parent=1 // pred_check
      _
    $region47: #{tpu_custom_call.1} parent=1 // pred_check_branch
      %114 = sbr.rel (0) target = $region49
    $region48: #{tpu_custom_call.1} parent=1 // pred_region
      _
    $region49: #{tpu_custom_call.1} parent=1 // pred_fallthru
      _
    // Predicated region
    $region50: #{tpu_custom_call.1} parent=1 // pred_check
      _
    $region51: #{tpu_custom_call.1} parent=1 // pred_check_branch
      %116 = sbr.rel (0) target = $region53
    $region52: #{tpu_custom_call.1} parent=1 // pred_region
      _
    $region53: #{tpu_custom_call.1} parent=1 // pred_fallthru
      _
    // Predicated region
    $region54: #{tpu_custom_call.1} parent=1 // pred_check
      _
    $region55: #{tpu_custom_call.1} parent=1 // pred_check_branch
      %118 = sbr.rel (0) target = $region57
    $region56: #{tpu_custom_call.1} parent=1 // pred_region
      _
    $region57: #{tpu_custom_call.1} parent=1 // pred_fallthru
      _
    // Predicated region
    $region58: #{tpu_custom_call.1} parent=1 // pred_check
      _
    $region59: #{tpu_custom_call.1} parent=1 // pred_check_branch
      %120 = sbr.rel (0) target = $region61
    $region60: #{tpu_custom_call.1} parent=1 // pred_region
      _
    $region61: #{tpu_custom_call.1} parent=1 // pred_fallthru
      _
    // Predicated region
    $region62: #{tpu_custom_call.1} parent=1 // pred_check
      _
    $region63: #{tpu_custom_call.1} parent=1 // pred_check_branch
      %122 = sbr.rel (0) target = $region65
    $region64: #{tpu_custom_call.1} parent=1 // pred_region
      _
    $region65: #{tpu_custom_call.1} parent=1 // pred_fallthru
      _
    // Predicated region
    $region66: #{tpu_custom_call.1} parent=1 // pred_check
      _
    $region67: #{tpu_custom_call.1} parent=1 // pred_check_branch
      %124 = sbr.rel (0) target = $region69
    $region68: #{tpu_custom_call.1} parent=1 // pred_region
      %s126 = ssub.s32 1024, 1024
      %127 = vsyncadd [#allocation15], %s126
      %s128 = sshll.u32 [#allocation14], 4
      %s129 = int_to_ptr.vmem [resolvable:$true] %s128
      %134 = dma.hbm_to_vmem [thread:$0]  %s16, 1024, %s129, [#allocation15], 64, 64, 4
    $region69: #{tpu_custom_call.1} parent=1 // pred_fallthru
      _
    // Predicated region
    $region70: #{tpu_custom_call.1} parent=1 // pred_check
      _
    $region71: #{tpu_custom_call.1} parent=1 // pred_check_branch
      %136 = sbr.rel (0) target = $region73
    $region72: #{tpu_custom_call.1} parent=1 // pred_region
      _
    $region73: #{tpu_custom_call.1} parent=1 // pred_fallthru
      _
    // Predicated region
    $region74: #{tpu_custom_call.1} parent=1 // pred_check
      _
    $region75: #{tpu_custom_call.1} parent=1 // pred_check_branch
      %138 = sbr.rel (0) target = $region77
    $region76: #{tpu_custom_call.1} parent=1 // pred_region
      %139 = dma.done [#allocation3], 32
    $region77: #{tpu_custom_call.1} parent=1 // pred_fallthru
      _
    // Predicated region
    $region78: #{tpu_custom_call.1} parent=1 // pred_check
      _
    $region79: #{tpu_custom_call.1} parent=1 // pred_check_branch
      %141 = sbr.rel (0) target = $region81
    $region80: #{tpu_custom_call.1} parent=1 // pred_region
      %142 = dma.done [#allocation6], 128
    $region81: #{tpu_custom_call.1} parent=1 // pred_fallthru
      _
    // Predicated region
    $region82: #{tpu_custom_call.1} parent=1 // pred_check
      _
    $region83: #{tpu_custom_call.1} parent=1 // pred_check_branch
      %144 = sbr.rel (0) target = $region85
    $region84: #{tpu_custom_call.1} parent=1 // pred_region
      %145 = dma.done [#allocation6], 32
    $region85: #{tpu_custom_call.1} parent=1 // pred_fallthru
      _
    // Predicated region
    $region86: #{tpu_custom_call.1} parent=1 // pred_check
      _
    $region87: #{tpu_custom_call.1} parent=1 // pred_check_branch
      %147 = sbr.rel (0) target = $region89
    $region88: #{tpu_custom_call.1} parent=1 // pred_region
      %148 = dma.done [#allocation9], 16
    $region89: #{tpu_custom_call.1} parent=1 // pred_fallthru
      _
    // Predicated region
    $region90: #{tpu_custom_call.1} parent=1 // pred_check
      _
    $region91: #{tpu_custom_call.1} parent=1 // pred_check_branch
      %150 = sbr.rel (0) target = $region93
    $region92: #{tpu_custom_call.1} parent=1 // pred_region
      %151 = dma.done [#allocation9], 512
    $region93: #{tpu_custom_call.1} parent=1 // pred_fallthru
      _
    // Predicated region
    $region94: #{tpu_custom_call.1} parent=1 // pred_check
      _
    $region95: #{tpu_custom_call.1} parent=1 // pred_check_branch
      %153 = sbr.rel (0) target = $region97
    $region96: #{tpu_custom_call.1} parent=1 // pred_region
      %154 = dma.done [#allocation12], 512
    $region97: #{tpu_custom_call.1} parent=1 // pred_fallthru
      _
    // Predicated region
    $region98: #{tpu_custom_call.1} parent=1 // pred_check
      _
    $region99: #{tpu_custom_call.1} parent=1 // pred_check_branch
      %156 = sbr.rel (0) target = $region101
    $region100: #{tpu_custom_call.1} parent=1 // pred_region
      %157 = dma.done [#allocation12], 64
    $region101: #{tpu_custom_call.1} parent=1 // pred_fallthru
      _
    // Predicated region
    $region102: #{tpu_custom_call.1} parent=1 // pred_check
      _
    $region103: #{tpu_custom_call.1} parent=1 // pred_check_branch
      %159 = sbr.rel (0) target = $region105
    $region104: #{tpu_custom_call.1} parent=1 // pred_region
      %160 = dma.done [#allocation15], 1024
    $region105: #{tpu_custom_call.1} parent=1 // pred_fallthru
      _
    %v162 = vld [vmem:[#allocation2] sm:$0x3]
    %v163 = vpack.c.bf16 %v162, %v162
    %v164 = vld [vmem:[#allocation5] sm:$0xf]
    %v165 = vld [vmem:[#allocation5 + $0x4] sm:$0xf]
    %v166 = vld [vmem:[%s2] sm:$0x1]
    %v168 = vlaneseq
    %v169 = vshrl.u32 %v168, 7
    %v170 = vsub.s32 0, %v169
    %v171 = vrot.slane %v166, %v170
    %v175 = vunpack.c.l.b16 %v164
    %v176 = vunpack.c.l.b16 %v165
    %v177 = vpack.c.b16 %v176, %v175
    %vm179 = vcmask 130048
    %v181 = vsel %vm179, %v163, 0
    %183 = vmatprep.subr.bf16.mxu0 0
    %184 = vmatpush1.bf16.msra.mxu0 %v177
    %185 = vmatprep.subr.bf16.mxu0 0
    %186 = vmatpush1.bf16.msra.mxu0 0
    %187 = vmatprep.subr.bf16.mxu0 0
    %188 = vmatpush1.bf16.msra.mxu0 0
    %189 = vmatprep.subr.bf16.mxu0 0
    %190 = vmatpush1.bf16.msra.mxu0 0
    %191 = vmatprep.subr.bf16.mxu0 0
    %192 = vmatpush1.bf16.msra.mxu0 0
    %193 = vmatprep.subr.bf16.mxu0 0
    %194 = vmatpush1.bf16.msra.mxu0 0
    %195 = vmatprep.subr.bf16.mxu0 0
    %196 = vmatpush1.bf16.msra.mxu0 0
    %197 = vmatprep.subr.bf16.mxu0 0
    %198 = vmatpush1.bf16.msra.mxu0 0
    %199 = vmatprep.subr.bf16.mxu0 0
    %200 = vmatpush1.bf16.msra.mxu0 0
    %201 = vmatprep.subr.bf16.mxu0 0
    %202 = vmatpush1.bf16.msra.mxu0 0
    %203 = vmatprep.subr.bf16.mxu0 0
    %204 = vmatpush1.bf16.msra.mxu0 0
    %205 = vmatprep.subr.bf16.mxu0 0
    %206 = vmatpush1.bf16.msra.mxu0 0
    %207 = vmatprep.subr.bf16.mxu0 0
    %208 = vmatpush1.bf16.msra.mxu0 0
    %209 = vmatprep.subr.bf16.mxu0 0
    %210 = vmatpush1.bf16.msra.mxu0 0
    %211 = vmatprep.subr.bf16.mxu0 0
    %212 = vmatpush1.bf16.msra.mxu0 0
    %213 = vmatprep.subr.bf16.mxu0 0
    %214 = vmatpush1.bf16.msra.mxu0 0
    %215 = vmatprep.mubr.bf16.mxu0 0
    %216 = vmatmul.mubr.bf16.gmra.mrb[0].mxu0 %v181
    %v217 = vpop.f32.mrb[0].mxu0
    %v218 = vadd.f32 %v171, %v217
    %v219 = vpop.f32.mrb[0].mxu0
    %v220 = vpop.f32.mrb[0].mxu0
    %v221 = vpop.f32.mrb[0].mxu0
    %222 = vdwg.mxu0
    %v223 = vmax.f32 %v218, 0.0
    %v224 = vpack.c.bf16 %v223, %v223
    %v225 = vld [vmem:[%s3] sm:$0xff]
    %v226 = vld [vmem:[%s3 + $0x8] sm:$0xff]
    %v227 = vld [vmem:[%s3 + $0x10] sm:$0xff]
    %v228 = vld [vmem:[%s3 + $0x18] sm:$0xff]
    %v229 = vld [vmem:[%s3 + $0x20] sm:$0xff]
    %v230 = vld [vmem:[%s3 + $0x28] sm:$0xff]
    %v231 = vld [vmem:[%s3 + $0x30] sm:$0xff]
    %v232 = vld [vmem:[%s3 + $0x38] sm:$0xff]
    %v233 = vld [vmem:[%s3 + $0x40] sm:$0xff]
    %v234 = vld [vmem:[%s3 + $0x48] sm:$0xff]
    %v235 = vld [vmem:[%s3 + $0x50] sm:$0xff]
    %v236 = vld [vmem:[%s3 + $0x58] sm:$0xff]
    %v237 = vld [vmem:[%s3 + $0x60] sm:$0xff]
    %v238 = vld [vmem:[%s3 + $0x68] sm:$0xff]
    %v239 = vld [vmem:[%s3 + $0x70] sm:$0xff]
    %v240 = vld [vmem:[%s3 + $0x78] sm:$0xff]
    %v241 = vld [vmem:[#allocation7] sm:$0x3]
    %v243 = vlaneseq
    %v244 = vshrl.u32 %v243, 7
    %v245 = vsub.s32 0, %v244
    %v246 = vrot.slane %v241, %v245
    %v247 = vlaneseq
    %v248 = vshrl.u32 %v247, 7
    %v249 = vsub.s32 1, %v248
    %v250 = vrot.slane %v241, %v249
    %v269 = vunpack.c.l.b16 %v225
    %v270 = vunpack.c.h.b16 %v225
    %v271 = vunpack.c.l.b16 %v226
    %v272 = vunpack.c.h.b16 %v226
    %v273 = vunpack.c.l.b16 %v227
    %v274 = vunpack.c.h.b16 %v227
    %v275 = vunpack.c.l.b16 %v228
    %v276 = vunpack.c.h.b16 %v228
    %v277 = vunpack.c.l.b16 %v229
    %v278 = vunpack.c.h.b16 %v229
    %v279 = vunpack.c.l.b16 %v230
    %v280 = vunpack.c.h.b16 %v230
    %v281 = vunpack.c.l.b16 %v231
    %v282 = vunpack.c.h.b16 %v231
    %v283 = vunpack.c.l.b16 %v232
    %v284 = vunpack.c.h.b16 %v232
    %v285 = vunpack.c.l.b16 %v233
    %v286 = vunpack.c.h.b16 %v233
    %v287 = vunpack.c.l.b16 %v234
    %v288 = vunpack.c.h.b16 %v234
    %v289 = vunpack.c.l.b16 %v235
    %v290 = vunpack.c.h.b16 %v235
    %v291 = vunpack.c.l.b16 %v236
    %v292 = vunpack.c.h.b16 %v236
    %v293 = vunpack.c.l.b16 %v237
    %v294 = vunpack.c.h.b16 %v237
    %v295 = vunpack.c.l.b16 %v238
    %v296 = vunpack.c.h.b16 %v238
    %v297 = vunpack.c.l.b16 %v239
    %v298 = vunpack.c.h.b16 %v239
    %v299 = vunpack.c.l.b16 %v240
    %v300 = vunpack.c.h.b16 %v240
    %v301 = vpack.c.b16 %v271, %v269
    %v302 = vpack.c.b16 %v272, %v270
    %v303 = vpack.c.b16 %v275, %v273
    %v304 = vpack.c.b16 %v276, %v274
    %v305 = vpack.c.b16 %v279, %v277
    %v306 = vpack.c.b16 %v280, %v278
    %v307 = vpack.c.b16 %v283, %v281
    %v308 = vpack.c.b16 %v284, %v282
    %v309 = vpack.c.b16 %v287, %v285
    %v310 = vpack.c.b16 %v288, %v286
    %v311 = vpack.c.b16 %v291, %v289
    %v312 = vpack.c.b16 %v292, %v290
    %v313 = vpack.c.b16 %v295, %v293
    %v314 = vpack.c.b16 %v296, %v294
    %v315 = vpack.c.b16 %v299, %v297
    %v316 = vpack.c.b16 %v300, %v298
    %333 = vmatprep.subr.bf16.mxu0 %v302
    %334 = vmatpush1.bf16.msra.mxu0 %v301
    %335 = vmatprep.subr.bf16.mxu0 %v304
    %336 = vmatpush1.bf16.msra.mxu0 %v303
    %337 = vmatprep.subr.bf16.mxu0 %v306
    %338 = vmatpush1.bf16.msra.mxu0 %v305
    %339 = vmatprep.subr.bf16.mxu0 %v308
    %340 = vmatpush1.bf16.msra.mxu0 %v307
    %341 = vmatprep.subr.bf16.mxu0 %v310
    %342 = vmatpush1.bf16.msra.mxu0 %v309
    %343 = vmatprep.subr.bf16.mxu0 %v312
    %344 = vmatpush1.bf16.msra.mxu0 %v311
    %345 = vmatprep.subr.bf16.mxu0 %v314
    %346 = vmatpush1.bf16.msra.mxu0 %v313
    %347 = vmatprep.subr.bf16.mxu0 %v316
    %348 = vmatpush1.bf16.msra.mxu0 %v315
    %349 = vmatprep.subr.bf16.mxu0 0
    %350 = vmatpush1.bf16.msra.mxu0 0
    %351 = vmatprep.subr.bf16.mxu0 0
    %352 = vmatpush1.bf16.msra.mxu0 0
    %353 = vmatprep.subr.bf16.mxu0 0
    %354 = vmatpush1.bf16.msra.mxu0 0
    %355 = vmatprep.subr.bf16.mxu0 0
    %356 = vmatpush1.bf16.msra.mxu0 0
    %357 = vmatprep.subr.bf16.mxu0 0
    %358 = vmatpush1.bf16.msra.mxu0 0
    %359 = vmatprep.subr.bf16.mxu0 0
    %360 = vmatpush1.bf16.msra.mxu0 0
    %361 = vmatprep.subr.bf16.mxu0 0
    %362 = vmatpush1.bf16.msra.mxu0 0
    %363 = vmatprep.subr.bf16.mxu0 0
    %364 = vmatpush1.bf16.msra.mxu0 0
    %365 = vmatprep.mubr.bf16.mxu0 0
    %366 = vmatmul.mubr.bf16.gmra.mrb[0].mxu0 %v224
    %v367 = vpop.f32.mrb[0].mxu0
    %v368 = vadd.f32 %v246, %v367
    %v369 = vpop.f32.mrb[0].mxu0
    %v370 = vadd.f32 %v250, %v369
    %v371 = vpop.f32.mrb[0].mxu0
    %v372 = vpop.f32.mrb[0].mxu0
    %373 = vdwg.mxu0
    %v374 = vmax.f32 %v368, 0.0
    %v375 = vmax.f32 %v370, 0.0
    %v376 = vpack.c.bf16 %v374, %v374
    %v377 = vpack.c.bf16 %v375, %v375
    %v378 = vld [vmem:[%s5] sm:$0xf]
    %v379 = vld [vmem:[%s5 + $0x4] sm:$0xf]
    %v380 = vld [vmem:[%s5 + $0x8] sm:$0xf]
    %v381 = vld [vmem:[%s5 + $0xc] sm:$0xf]
    %v382 = vld [vmem:[%s5 + $0x10] sm:$0xf]
    %v383 = vld [vmem:[%s5 + $0x14] sm:$0xf]
    %v384 = vld [vmem:[%s5 + $0x18] sm:$0xf]
    %v385 = vld [vmem:[%s5 + $0x1c] sm:$0xf]
    %v386 = vld [vmem:[%s5 + $0x20] sm:$0xf]
    %v387 = vld [vmem:[%s5 + $0x24] sm:$0xf]
    %v388 = vld [vmem:[%s5 + $0x28] sm:$0xf]
    %v389 = vld [vmem:[%s5 + $0x2c] sm:$0xf]
    %v390 = vld [vmem:[%s5 + $0x30] sm:$0xf]
    %v391 = vld [vmem:[%s5 + $0x34] sm:$0xf]
    %v392 = vld [vmem:[%s5 + $0x38] sm:$0xf]
    %v393 = vld [vmem:[%s5 + $0x3c] sm:$0xf]
    %v394 = vld [vmem:[%s5 + $0x40] sm:$0xf]
    %v395 = vld [vmem:[%s5 + $0x44] sm:$0xf]
    %v396 = vld [vmem:[%s5 + $0x48] sm:$0xf]
    %v397 = vld [vmem:[%s5 + $0x4c] sm:$0xf]
    %v398 = vld [vmem:[%s5 + $0x50] sm:$0xf]
    %v399 = vld [vmem:[%s5 + $0x54] sm:$0xf]
    %v400 = vld [vmem:[%s5 + $0x58] sm:$0xf]
    %v401 = vld [vmem:[%s5 + $0x5c] sm:$0xf]
    %v402 = vld [vmem:[%s5 + $0x60] sm:$0xf]
    %v403 = vld [vmem:[%s5 + $0x64] sm:$0xf]
    %v404 = vld [vmem:[%s5 + $0x68] sm:$0xf]
    %v405 = vld [vmem:[%s5 + $0x6c] sm:$0xf]
    %v406 = vld [vmem:[%s5 + $0x70] sm:$0xf]
    %v407 = vld [vmem:[%s5 + $0x74] sm:$0xf]
    %v408 = vld [vmem:[%s5 + $0x78] sm:$0xf]
    %v409 = vld [vmem:[%s5 + $0x7c] sm:$0xf]
    %v410 = vld [vmem:[#allocation8] sm:$0x1]
    %v412 = vlaneseq
    %v413 = vshrl.u32 %v412, 7
    %v414 = vsub.s32 0, %v413
    %v415 = vrot.slane %v410, %v414
    %v449 = vunpack.c.l.b16 %v378
    %v450 = vunpack.c.l.b16 %v379
    %v451 = vunpack.c.l.b16 %v380
    %v452 = vunpack.c.l.b16 %v381
    %v453 = vunpack.c.l.b16 %v382
    %v454 = vunpack.c.l.b16 %v383
    %v455 = vunpack.c.l.b16 %v384
    %v456 = vunpack.c.l.b16 %v385
    %v457 = vunpack.c.l.b16 %v386
    %v458 = vunpack.c.l.b16 %v387
    %v459 = vunpack.c.l.b16 %v388
    %v460 = vunpack.c.l.b16 %v389
    %v461 = vunpack.c.l.b16 %v390
    %v462 = vunpack.c.l.b16 %v391
    %v463 = vunpack.c.l.b16 %v392
    %v464 = vunpack.c.l.b16 %v393
    %v465 = vunpack.c.l.b16 %v394
    %v466 = vunpack.c.l.b16 %v395
    %v467 = vunpack.c.l.b16 %v396
    %v468 = vunpack.c.l.b16 %v397
    %v469 = vunpack.c.l.b16 %v398
    %v470 = vunpack.c.l.b16 %v399
    %v471 = vunpack.c.l.b16 %v400
    %v472 = vunpack.c.l.b16 %v401
    %v473 = vunpack.c.l.b16 %v402
    %v474 = vunpack.c.l.b16 %v403
    %v475 = vunpack.c.l.b16 %v404
    %v476 = vunpack.c.l.b16 %v405
    %v477 = vunpack.c.l.b16 %v406
    %v478 = vunpack.c.l.b16 %v407
    %v479 = vunpack.c.l.b16 %v408
    %v480 = vunpack.c.l.b16 %v409
    %v481 = vpack.c.b16 %v450, %v449
    %v482 = vpack.c.b16 %v452, %v451
    %v483 = vpack.c.b16 %v454, %v453
    %v484 = vpack.c.b16 %v456, %v455
    %v485 = vpack.c.b16 %v458, %v457
    %v486 = vpack.c.b16 %v460, %v459
    %v487 = vpack.c.b16 %v462, %v461
    %v488 = vpack.c.b16 %v464, %v463
    %v489 = vpack.c.b16 %v466, %v465
    %v490 = vpack.c.b16 %v468, %v467
    %v491 = vpack.c.b16 %v470, %v469
    %v492 = vpack.c.b16 %v472, %v471
    %v493 = vpack.c.b16 %v474, %v473
    %v494 = vpack.c.b16 %v476, %v475
    %v495 = vpack.c.b16 %v478, %v477
    %v496 = vpack.c.b16 %v480, %v479
    %513 = vmatprep.subr.bf16.mxu0 0
    %514 = vmatpush1.bf16.msra.mxu0 %v481
    %515 = vmatprep.subr.bf16.mxu0 0
    %516 = vmatpush1.bf16.msra.mxu0 %v482
    %517 = vmatprep.subr.bf16.mxu0 0
    %518 = vmatpush1.bf16.msra.mxu0 %v483
    %519 = vmatprep.subr.bf16.mxu0 0
    %520 = vmatpush1.bf16.msra.mxu0 %v484
    %521 = vmatprep.subr.bf16.mxu0 0
    %522 = vmatpush1.bf16.msra.mxu0 %v485
    %523 = vmatprep.subr.bf16.mxu0 0
    %524 = vmatpush1.bf16.msra.mxu0 %v486
    %525 = vmatprep.subr.bf16.mxu0 0
    %526 = vmatpush1.bf16.msra.mxu0 %v487
    %527 = vmatprep.subr.bf16.mxu0 0
    %528 = vmatpush1.bf16.msra.mxu0 %v488
    %529 = vmatprep.subr.bf16.mxu0 0
    %530 = vmatpush1.bf16.msra.mxu0 %v489
    %531 = vmatprep.subr.bf16.mxu0 0
    %532 = vmatpush1.bf16.msra.mxu0 %v490
    %533 = vmatprep.subr.bf16.mxu0 0
    %534 = vmatpush1.bf16.msra.mxu0 %v491
    %535 = vmatprep.subr.bf16.mxu0 0
    %536 = vmatpush1.bf16.msra.mxu0 %v492
    %537 = vmatprep.subr.bf16.mxu0 0
    %538 = vmatpush1.bf16.msra.mxu0 %v493
    %539 = vmatprep.subr.bf16.mxu0 0
    %540 = vmatpush1.bf16.msra.mxu0 %v494
    %541 = vmatprep.subr.bf16.mxu0 0
    %542 = vmatpush1.bf16.msra.mxu0 %v495
    %543 = vmatprep.subr.bf16.mxu0 0
    %544 = vmatpush1.bf16.msra.mxu0 %v496
    %545 = vmatprep.mubr.bf16.mxu0 %v377
    %546 = vmatmul.mubr.bf16.gmra.mrb[0].mxu0 %v376
    %v547 = vpop.f32.mrb[0].mxu0
    %v548 = vadd.f32 %v415, %v547
    %v549 = vpop.f32.mrb[0].mxu0
    %v550 = vpop.f32.mrb[0].mxu0
    %v551 = vpop.f32.mrb[0].mxu0
    %552 = vdwg.mxu0
    %v553 = vmax.f32 %v548, 0.0
    %v554 = vld [vmem:[#allocation10] sm:$0xff]
    %v555 = vld [vmem:[#allocation10 + $0x8] sm:$0xff]
    %v556 = vld [vmem:[#allocation10 + $0x10] sm:$0xff]
    %v557 = vld [vmem:[#allocation10 + $0x18] sm:$0xff]
    %v558 = vld [vmem:[%s8] sm:$0xf]
    %v560 = vlaneseq
    %v561 = vshrl.u32 %v560, 7
    %v562 = vsub.s32 0, %v561
    %v563 = vrot.slane %v558, %v562
    %v564 = vlaneseq
    %v565 = vshrl.u32 %v564, 7
    %v566 = vsub.s32 1, %v565
    %v567 = vrot.slane %v558, %v566
    %v568 = vlaneseq
    %v569 = vshrl.u32 %v568, 7
    %v570 = vsub.s32 2, %v569
    %v571 = vrot.slane %v558, %v570
    %v572 = vlaneseq
    %v573 = vshrl.u32 %v572, 7
    %v574 = vsub.s32 3, %v573
    %v575 = vrot.slane %v558, %v574
    %v584 = vunpack.c.l.b16 %v554
    %v585 = vunpack.c.h.b16 %v554
    %v586 = vunpack.c.l.b16 %v555
    %v587 = vunpack.c.h.b16 %v555
    %v588 = vunpack.c.l.b16 %v556
    %v589 = vunpack.c.h.b16 %v556
    %v590 = vunpack.c.l.b16 %v557
    %v591 = vunpack.c.h.b16 %v557
    %v592 = vpack.c.b16 %v588, %v584
    %v593 = vpack.c.b16 %v589, %v585
    %v594 = vpack.c.b16 %v590, %v586
    %v595 = vpack.c.b16 %v591, %v587
    %600 = vmatprep.subr.bf16.mxu0 %v593
    %601 = vmatpush1.bf16.msra.mxu0 %v592
    %602 = vmatprep.subr.bf16.mxu0 0
    %603 = vmatpush1.bf16.msra.mxu0 0
    %604 = vmatprep.subr.bf16.mxu0 0
    %605 = vmatpush1.bf16.msra.mxu0 0
    %606 = vmatprep.subr.bf16.mxu0 0
    %607 = vmatpush1.bf16.msra.mxu0 0
    %608 = vmatprep.subr.bf16.mxu0 0
    %609 = vmatpush1.bf16.msra.mxu0 0
    %610 = vmatprep.subr.bf16.mxu0 0
    %611 = vmatpush1.bf16.msra.mxu0 0
    %612 = vmatprep.subr.bf16.mxu0 0
    %613 = vmatpush1.bf16.msra.mxu0 0
    %614 = vmatprep.subr.bf16.mxu0 0
    %615 = vmatpush1.bf16.msra.mxu0 0
    %616 = vmatprep.subr.bf16.mxu0 0
    %617 = vmatpush1.bf16.msra.mxu0 0
    %618 = vmatprep.subr.bf16.mxu0 0
    %619 = vmatpush1.bf16.msra.mxu0 0
    %620 = vmatprep.subr.bf16.mxu0 0
    %621 = vmatpush1.bf16.msra.mxu0 0
    %622 = vmatprep.subr.bf16.mxu0 0
    %623 = vmatpush1.bf16.msra.mxu0 0
    %624 = vmatprep.subr.bf16.mxu0 0
    %625 = vmatpush1.bf16.msra.mxu0 0
    %626 = vmatprep.subr.bf16.mxu0 0
    %627 = vmatpush1.bf16.msra.mxu0 0
    %628 = vmatprep.subr.bf16.mxu0 0
    %629 = vmatpush1.bf16.msra.mxu0 0
    %630 = vmatprep.subr.bf16.mxu0 0
    %631 = vmatpush1.bf16.msra.mxu0 0
    %632 = vmatprep.mubr.bf16.mxu0 0
    %633 = vmatmul.mubr.bf16.gmra.mrb[0].mxu0 %v181
    %v634 = vpop.f32.mrb[0].mxu0
    %v635 = vadd.f32 %v563, %v634
    %v636 = vpop.f32.mrb[0].mxu0
    %v637 = vadd.f32 %v567, %v636
    %v638 = vpop.f32.mrb[0].mxu0
    %v639 = vpop.f32.mrb[0].mxu0
    %640 = vdwg.mxu0
    %641 = vmatprep.subr.bf16.mxu0 %v595
    %642 = vmatpush1.bf16.msra.mxu0 %v594
    %643 = vmatprep.subr.bf16.mxu0 0
    %644 = vmatpush1.bf16.msra.mxu0 0
    %645 = vmatprep.subr.bf16.mxu0 0
    %646 = vmatpush1.bf16.msra.mxu0 0
    %647 = vmatprep.subr.bf16.mxu0 0
    %648 = vmatpush1.bf16.msra.mxu0 0
    %649 = vmatprep.subr.bf16.mxu0 0
    %650 = vmatpush1.bf16.msra.mxu0 0
    %651 = vmatprep.subr.bf16.mxu0 0
    %652 = vmatpush1.bf16.msra.mxu0 0
    %653 = vmatprep.subr.bf16.mxu0 0
    %654 = vmatpush1.bf16.msra.mxu0 0
    %655 = vmatprep.subr.bf16.mxu0 0
    %656 = vmatpush1.bf16.msra.mxu0 0
    %657 = vmatprep.subr.bf16.mxu0 0
    %658 = vmatpush1.bf16.msra.mxu0 0
    %659 = vmatprep.subr.bf16.mxu0 0
    %660 = vmatpush1.bf16.msra.mxu0 0
    %661 = vmatprep.subr.bf16.mxu0 0
    %662 = vmatpush1.bf16.msra.mxu0 0
    %663 = vmatprep.subr.bf16.mxu0 0
    %664 = vmatpush1.bf16.msra.mxu0 0
    %665 = vmatprep.subr.bf16.mxu0 0
    %666 = vmatpush1.bf16.msra.mxu0 0
    %667 = vmatprep.subr.bf16.mxu0 0
    %668 = vmatpush1.bf16.msra.mxu0 0
    %669 = vmatprep.subr.bf16.mxu0 0
    %670 = vmatpush1.bf16.msra.mxu0 0
    %671 = vmatprep.subr.bf16.mxu0 0
    %672 = vmatpush1.bf16.msra.mxu0 0
    %673 = vmatprep.mubr.bf16.mxu0 0
    %674 = vmatmul.mubr.bf16.gmra.mrb[0].mxu0 %v181
    %v675 = vpop.f32.mrb[0].mxu0
    %v676 = vadd.f32 %v571, %v675
    %v677 = vpop.f32.mrb[0].mxu0
    %v678 = vadd.f32 %v575, %v677
    %v679 = vpop.f32.mrb[0].mxu0
    %v680 = vpop.f32.mrb[0].mxu0
    %681 = vdwg.mxu0
    %v682 = vld [vmem:[#allocation11] sm:$0xff]
    %v683 = vld [vmem:[#allocation11 + $0x8] sm:$0xff]
    %v684 = vld [vmem:[#allocation11 + $0x10] sm:$0xff]
    %v685 = vld [vmem:[#allocation11 + $0x18] sm:$0xff]
    %v686 = vld [vmem:[#allocation13] sm:$0xf]
    %v688 = vlaneseq
    %v689 = vshrl.u32 %v688, 7
    %v690 = vsub.s32 0, %v689
    %v691 = vrot.slane %v686, %v690
    %v692 = vlaneseq
    %v693 = vshrl.u32 %v692, 7
    %v694 = vsub.s32 1, %v693
    %v695 = vrot.slane %v686, %v694
    %v696 = vlaneseq
    %v697 = vshrl.u32 %v696, 7
    %v698 = vsub.s32 2, %v697
    %v699 = vrot.slane %v686, %v698
    %v700 = vlaneseq
    %v701 = vshrl.u32 %v700, 7
    %v702 = vsub.s32 3, %v701
    %v703 = vrot.slane %v686, %v702
    %v712 = vunpack.c.l.b16 %v682
    %v713 = vunpack.c.h.b16 %v682
    %v714 = vunpack.c.l.b16 %v683
    %v715 = vunpack.c.h.b16 %v683
    %v716 = vunpack.c.l.b16 %v684
    %v717 = vunpack.c.h.b16 %v684
    %v718 = vunpack.c.l.b16 %v685
    %v719 = vunpack.c.h.b16 %v685
    %v720 = vpack.c.b16 %v716, %v712
    %v721 = vpack.c.b16 %v717, %v713
    %v722 = vpack.c.b16 %v718, %v714
    %v723 = vpack.c.b16 %v719, %v715
    %728 = vmatprep.subr.bf16.mxu0 %v721
    %729 = vmatpush1.bf16.msra.mxu0 %v720
    %730 = vmatprep.subr.bf16.mxu0 0
    %731 = vmatpush1.bf16.msra.mxu0 0
    %732 = vmatprep.subr.bf16.mxu0 0
    %733 = vmatpush1.bf16.msra.mxu0 0
    %734 = vmatprep.subr.bf16.mxu0 0
    %735 = vmatpush1.bf16.msra.mxu0 0
    %736 = vmatprep.subr.bf16.mxu0 0
    %737 = vmatpush1.bf16.msra.mxu0 0
    %738 = vmatprep.subr.bf16.mxu0 0
    %739 = vmatpush1.bf16.msra.mxu0 0
    %740 = vmatprep.subr.bf16.mxu0 0
    %741 = vmatpush1.bf16.msra.mxu0 0
    %742 = vmatprep.subr.bf16.mxu0 0
    %743 = vmatpush1.bf16.msra.mxu0 0
    %744 = vmatprep.subr.bf16.mxu0 0
    %745 = vmatpush1.bf16.msra.mxu0 0
    %746 = vmatprep.subr.bf16.mxu0 0
    %747 = vmatpush1.bf16.msra.mxu0 0
    %748 = vmatprep.subr.bf16.mxu0 0
    %749 = vmatpush1.bf16.msra.mxu0 0
    %750 = vmatprep.subr.bf16.mxu0 0
    %751 = vmatpush1.bf16.msra.mxu0 0
    %752 = vmatprep.subr.bf16.mxu0 0
    %753 = vmatpush1.bf16.msra.mxu0 0
    %754 = vmatprep.subr.bf16.mxu0 0
    %755 = vmatpush1.bf16.msra.mxu0 0
    %756 = vmatprep.subr.bf16.mxu0 0
    %757 = vmatpush1.bf16.msra.mxu0 0
    %758 = vmatprep.subr.bf16.mxu0 0
    %759 = vmatpush1.bf16.msra.mxu0 0
    %760 = vmatprep.mubr.bf16.mxu0 0
    %761 = vmatmul.mubr.bf16.gmra.mrb[0].mxu0 %v181
    %v762 = vpop.f32.mrb[0].mxu0
    %v763 = vadd.f32 %v691, %v762
    %v764 = vpop.f32.mrb[0].mxu0
    %v765 = vadd.f32 %v695, %v764
    %v766 = vpop.f32.mrb[0].mxu0
    %v767 = vpop.f32.mrb[0].mxu0
    %768 = vdwg.mxu0
    %769 = vmatprep.subr.bf16.mxu0 %v723
    %770 = vmatpush1.bf16.msra.mxu0 %v722
    %771 = vmatprep.subr.bf16.mxu0 0
    %772 = vmatpush1.bf16.msra.mxu0 0
    %773 = vmatprep.subr.bf16.mxu0 0
    %774 = vmatpush1.bf16.msra.mxu0 0
    %775 = vmatprep.subr.bf16.mxu0 0
    %776 = vmatpush1.bf16.msra.mxu0 0
    %777 = vmatprep.subr.bf16.mxu0 0
    %778 = vmatpush1.bf16.msra.mxu0 0
    %779 = vmatprep.subr.bf16.mxu0 0
    %780 = vmatpush1.bf16.msra.mxu0 0
    %781 = vmatprep.subr.bf16.mxu0 0
    %782 = vmatpush1.bf16.msra.mxu0 0
    %783 = vmatprep.subr.bf16.mxu0 0
    %784 = vmatpush1.bf16.msra.mxu0 0
    %785 = vmatprep.subr.bf16.mxu0 0
    %786 = vmatpush1.bf16.msra.mxu0 0
    %787 = vmatprep.subr.bf16.mxu0 0
    %788 = vmatpush1.bf16.msra.mxu0 0
    %789 = vmatprep.subr.bf16.mxu0 0
    %790 = vmatpush1.bf16.msra.mxu0 0
    %791 = vmatprep.subr.bf16.mxu0 0
    %792 = vmatpush1.bf16.msra.mxu0 0
    %793 = vmatprep.subr.bf16.mxu0 0
    %794 = vmatpush1.bf16.msra.mxu0 0
    %795 = vmatprep.subr.bf16.mxu0 0
    %796 = vmatpush1.bf16.msra.mxu0 0
    %797 = vmatprep.subr.bf16.mxu0 0
    %798 = vmatpush1.bf16.msra.mxu0 0
    %799 = vmatprep.subr.bf16.mxu0 0
    %800 = vmatpush1.bf16.msra.mxu0 0
    %801 = vmatprep.mubr.bf16.mxu0 0
    %802 = vmatmul.mubr.bf16.gmra.mrb[0].mxu0 %v181
    %v803 = vpop.f32.mrb[0].mxu0
    %v804 = vadd.f32 %v699, %v803
    %v805 = vpop.f32.mrb[0].mxu0
    %v806 = vadd.f32 %v703, %v805
    %v807 = vpop.f32.mrb[0].mxu0
    %v808 = vpop.f32.mrb[0].mxu0
    %809 = vdwg.mxu0
    %v810 = vld [vmem:[%s11] sm:$0xff]
    %v811 = vld [vmem:[%s11 + $0x8] sm:$0xff]
    %v812 = vld [vmem:[%s11 + $0x10] sm:$0xff]
    %v813 = vld [vmem:[%s11 + $0x18] sm:$0xff]
    %v814 = vld [vmem:[%s12] sm:$0xf]
    %v816 = vlaneseq
    %v817 = vshrl.u32 %v816, 7
    %v818 = vsub.s32 0, %v817
    %v819 = vrot.slane %v814, %v818
    %v820 = vlaneseq
    %v821 = vshrl.u32 %v820, 7
    %v822 = vsub.s32 1, %v821
    %v823 = vrot.slane %v814, %v822
    %v824 = vlaneseq
    %v825 = vshrl.u32 %v824, 7
    %v826 = vsub.s32 2, %v825
    %v827 = vrot.slane %v814, %v826
    %v828 = vlaneseq
    %v829 = vshrl.u32 %v828, 7
    %v830 = vsub.s32 3, %v829
    %v831 = vrot.slane %v814, %v830
    %v840 = vunpack.c.l.b16 %v810
    %v841 = vunpack.c.h.b16 %v810
    %v842 = vunpack.c.l.b16 %v811
    %v843 = vunpack.c.h.b16 %v811
    %v844 = vunpack.c.l.b16 %v812
    %v845 = vunpack.c.h.b16 %v812
    %v846 = vunpack.c.l.b16 %v813
    %v847 = vunpack.c.h.b16 %v813
    %v848 = vpack.c.b16 %v844, %v840
    %v849 = vpack.c.b16 %v845, %v841
    %v850 = vpack.c.b16 %v846, %v842
    %v851 = vpack.c.b16 %v847, %v843
    %856 = vmatprep.subr.bf16.mxu0 %v849
    %857 = vmatpush1.bf16.msra.mxu0 %v848
    %858 = vmatprep.subr.bf16.mxu0 0
    %859 = vmatpush1.bf16.msra.mxu0 0
    %860 = vmatprep.subr.bf16.mxu0 0
    %861 = vmatpush1.bf16.msra.mxu0 0
    %862 = vmatprep.subr.bf16.mxu0 0
    %863 = vmatpush1.bf16.msra.mxu0 0
    %864 = vmatprep.subr.bf16.mxu0 0
    %865 = vmatpush1.bf16.msra.mxu0 0
    %866 = vmatprep.subr.bf16.mxu0 0
    %867 = vmatpush1.bf16.msra.mxu0 0
    %868 = vmatprep.subr.bf16.mxu0 0
    %869 = vmatpush1.bf16.msra.mxu0 0
    %870 = vmatprep.subr.bf16.mxu0 0
    %871 = vmatpush1.bf16.msra.mxu0 0
    %872 = vmatprep.subr.bf16.mxu0 0
    %873 = vmatpush1.bf16.msra.mxu0 0
    %874 = vmatprep.subr.bf16.mxu0 0
    %875 = vmatpush1.bf16.msra.mxu0 0
    %876 = vmatprep.subr.bf16.mxu0 0
    %877 = vmatpush1.bf16.msra.mxu0 0
    %878 = vmatprep.subr.bf16.mxu0 0
    %879 = vmatpush1.bf16.msra.mxu0 0
    %880 = vmatprep.subr.bf16.mxu0 0
    %881 = vmatpush1.bf16.msra.mxu0 0
    %882 = vmatprep.subr.bf16.mxu0 0
    %883 = vmatpush1.bf16.msra.mxu0 0
    %884 = vmatprep.subr.bf16.mxu0 0
    %885 = vmatpush1.bf16.msra.mxu0 0
    %886 = vmatprep.subr.bf16.mxu0 0
    %887 = vmatpush1.bf16.msra.mxu0 0
    %888 = vmatprep.mubr.bf16.mxu0 0
    %889 = vmatmul.mubr.bf16.gmra.mrb[0].mxu0 %v181
    %v890 = vpop.f32.mrb[0].mxu0
    %v891 = vadd.f32 %v819, %v890
    %v892 = vpop.f32.mrb[0].mxu0
    %v893 = vadd.f32 %v823, %v892
    %v894 = vpop.f32.mrb[0].mxu0
    %v895 = vpop.f32.mrb[0].mxu0
    %896 = vdwg.mxu0
    %897 = vmatprep.subr.bf16.mxu0 %v851
    %898 = vmatpush1.bf16.msra.mxu0 %v850
    %899 = vmatprep.subr.bf16.mxu0 0
    %900 = vmatpush1.bf16.msra.mxu0 0
    %901 = vmatprep.subr.bf16.mxu0 0
    %902 = vmatpush1.bf16.msra.mxu0 0
    %903 = vmatprep.subr.bf16.mxu0 0
    %904 = vmatpush1.bf16.msra.mxu0 0
    %905 = vmatprep.subr.bf16.mxu0 0
    %906 = vmatpush1.bf16.msra.mxu0 0
    %907 = vmatprep.subr.bf16.mxu0 0
    %908 = vmatpush1.bf16.msra.mxu0 0
    %909 = vmatprep.subr.bf16.mxu0 0
    %910 = vmatpush1.bf16.msra.mxu0 0
    %911 = vmatprep.subr.bf16.mxu0 0
    %912 = vmatpush1.bf16.msra.mxu0 0
    %913 = vmatprep.subr.bf16.mxu0 0
    %914 = vmatpush1.bf16.msra.mxu0 0
    %915 = vmatprep.subr.bf16.mxu0 0
    %916 = vmatpush1.bf16.msra.mxu0 0
    %917 = vmatprep.subr.bf16.mxu0 0
    %918 = vmatpush1.bf16.msra.mxu0 0
    %919 = vmatprep.subr.bf16.mxu0 0
    %920 = vmatpush1.bf16.msra.mxu0 0
    %921 = vmatprep.subr.bf16.mxu0 0
    %922 = vmatpush1.bf16.msra.mxu0 0
    %923 = vmatprep.subr.bf16.mxu0 0
    %924 = vmatpush1.bf16.msra.mxu0 0
    %925 = vmatprep.subr.bf16.mxu0 0
    %926 = vmatpush1.bf16.msra.mxu0 0
    %927 = vmatprep.subr.bf16.mxu0 0
    %928 = vmatpush1.bf16.msra.mxu0 0
    %929 = vmatprep.mubr.bf16.mxu0 0
    %930 = vmatmul.mubr.bf16.gmra.mrb[0].mxu0 %v181
    %v931 = vpop.f32.mrb[0].mxu0
    %v932 = vadd.f32 %v827, %v931
    %v933 = vpop.f32.mrb[0].mxu0
    %v934 = vadd.f32 %v831, %v933
    %v935 = vpop.f32.mrb[0].mxu0
    %v936 = vpop.f32.mrb[0].mxu0
    %937 = vdwg.mxu0
    %v938 = vmul.f32 %v891, %v635
    %v939 = vmul.f32 %v893, %v637
    %v940 = vmul.f32 %v932, %v676
    %v941 = vmul.f32 %v934, %v678
    %v942 = vld [vmem:[%s13] sm:$0xff]
    %v943 = vld [vmem:[%s13 + $0x8] sm:$0xff]
    %v944 = vld [vmem:[%s13 + $0x10] sm:$0xff]
    %v945 = vld [vmem:[%s13 + $0x18] sm:$0xff]
    %v946 = vld [vmem:[%s13 + $0x20] sm:$0xff]
    %v947 = vld [vmem:[%s13 + $0x28] sm:$0xff]
    %v948 = vld [vmem:[%s13 + $0x30] sm:$0xff]
    %v949 = vld [vmem:[%s13 + $0x38] sm:$0xff]
    %v950 = vld [vmem:[%s13 + $0x40] sm:$0xff]
    %v951 = vld [vmem:[%s13 + $0x48] sm:$0xff]
    %v952 = vld [vmem:[%s13 + $0x50] sm:$0xff]
    %v953 = vld [vmem:[%s13 + $0x58] sm:$0xff]
    %v954 = vld [vmem:[%s13 + $0x60] sm:$0xff]
    %v955 = vld [vmem:[%s13 + $0x68] sm:$0xff]
    %v956 = vld [vmem:[%s13 + $0x70] sm:$0xff]
    %v957 = vld [vmem:[%s13 + $0x78] sm:$0xff]
    %v958 = vld [vmem:[%s13 + $0x80] sm:$0xff]
    %v959 = vld [vmem:[%s13 + $0x88] sm:$0xff]
    %v960 = vld [vmem:[%s13 + $0x90] sm:$0xff]
    %v961 = vld [vmem:[%s13 + $0x98] sm:$0xff]
    %v962 = vld [vmem:[%s13 + $0xa0] sm:$0xff]
    %v963 = vld [vmem:[%s13 + $0xa8] sm:$0xff]
    %v964 = vld [vmem:[%s13 + $0xb0] sm:$0xff]
    %v965 = vld [vmem:[%s13 + $0xb8] sm:$0xff]
    %v966 = vld [vmem:[%s13 + $0xc0] sm:$0xff]
    %v967 = vld [vmem:[%s13 + $0xc8] sm:$0xff]
    %v968 = vld [vmem:[%s13 + $0xd0] sm:$0xff]
    %v969 = vld [vmem:[%s13 + $0xd8] sm:$0xff]
    %v970 = vld [vmem:[%s13 + $0xe0] sm:$0xff]
    %v971 = vld [vmem:[%s13 + $0xe8] sm:$0xff]
    %v972 = vld [vmem:[%s13 + $0xf0] sm:$0xff]
    %v973 = vld [vmem:[%s13 + $0xf8] sm:$0xff]
    %v974 = vld [vmem:[%s13 + $0x100] sm:$0xff]
    %v975 = vld [vmem:[%s13 + $0x108] sm:$0xff]
    %v976 = vld [vmem:[%s13 + $0x110] sm:$0xff]
    %v977 = vld [vmem:[%s13 + $0x118] sm:$0xff]
    %v978 = vld [vmem:[%s13 + $0x120] sm:$0xff]
    %v979 = vld [vmem:[%s13 + $0x128] sm:$0xff]
    %v980 = vld [vmem:[%s13 + $0x130] sm:$0xff]
    %v981 = vld [vmem:[%s13 + $0x138] sm:$0xff]
    %v982 = vld [vmem:[%s13 + $0x140] sm:$0xff]
    %v983 = vld [vmem:[%s13 + $0x148] sm:$0xff]
    %v984 = vld [vmem:[%s13 + $0x150] sm:$0xff]
    %v985 = vld [vmem:[%s13 + $0x158] sm:$0xff]
    %v986 = vld [vmem:[%s13 + $0x160] sm:$0xff]
    %v987 = vld [vmem:[%s13 + $0x168] sm:$0xff]
    %v988 = vld [vmem:[%s13 + $0x170] sm:$0xff]
    %v989 = vld [vmem:[%s13 + $0x178] sm:$0xff]
    %v990 = vld [vmem:[%s13 + $0x180] sm:$0xff]
    %v991 = vld [vmem:[%s13 + $0x188] sm:$0xff]
    %v992 = vld [vmem:[%s13 + $0x190] sm:$0xff]
    %v993 = vld [vmem:[%s13 + $0x198] sm:$0xff]
    %v994 = vld [vmem:[%s13 + $0x1a0] sm:$0xff]
    %v995 = vld [vmem:[%s13 + $0x1a8] sm:$0xff]
    %v996 = vld [vmem:[%s13 + $0x1b0] sm:$0xff]
    %v997 = vld [vmem:[%s13 + $0x1b8] sm:$0xff]
    %v998 = vld [vmem:[%s13 + $0x1c0] sm:$0xff]
    %v999 = vld [vmem:[%s13 + $0x1c8] sm:$0xff]
    %v1000 = vld [vmem:[%s13 + $0x1d0] sm:$0xff]
    %v1001 = vld [vmem:[%s13 + $0x1d8] sm:$0xff]
    %v1002 = vld [vmem:[%s13 + $0x1e0] sm:$0xff]
    %v1003 = vld [vmem:[%s13 + $0x1e8] sm:$0xff]
    %v1004 = vld [vmem:[%s13 + $0x1f0] sm:$0xff]
    %v1005 = vld [vmem:[%s13 + $0x1f8] sm:$0xff]
    %1006 = vmatprep.subr.mxu0 0.0
    %1007 = vmatpush1.msra.mxu0 %v942
    %1008 = vmatprep.subr.mxu0 0.0
    %1009 = vmatpush1.msra.mxu0 %v943
    %1010 = vmatprep.subr.mxu0 0.0
    %1011 = vmatpush1.msra.mxu0 %v944
    %1012 = vmatprep.subr.mxu0 0.0
    %1013 = vmatpush1.msra.mxu0 %v945
    %1014 = vmatprep.subr.mxu0 0.0
    %1015 = vmatpush1.msra.mxu0 %v946
    %1016 = vmatprep.subr.mxu0 0.0
    %1017 = vmatpush1.msra.mxu0 %v947
    %1018 = vmatprep.subr.mxu0 0.0
    %1019 = vmatpush1.msra.mxu0 %v948
    %1020 = vmatprep.subr.mxu0 0.0
    %1021 = vmatpush1.msra.mxu0 %v949
    %1022 = vmatprep.subr.mxu0 0.0
    %1023 = vmatpush1.msra.mxu0 %v950
    %1024 = vmatprep.subr.mxu0 0.0
    %1025 = vmatpush1.msra.mxu0 %v951
    %1026 = vmatprep.subr.mxu0 0.0
    %1027 = vmatpush1.msra.mxu0 %v952
    %1028 = vmatprep.subr.mxu0 0.0
    %1029 = vmatpush1.msra.mxu0 %v953
    %1030 = vmatprep.subr.mxu0 0.0
    %1031 = vmatpush1.msra.mxu0 %v954
    %1032 = vmatprep.subr.mxu0 0.0
    %1033 = vmatpush1.msra.mxu0 %v955
    %1034 = vmatprep.subr.mxu0 0.0
    %1035 = vmatpush1.msra.mxu0 %v956
    %1036 = vmatprep.subr.mxu0 0.0
    %1037 = vmatpush1.msra.mxu0 %v957
    %1038 = vmatprep.subr.mxu0 0.0
    %1039 = vmatpush1.msra.mxu0 %v958
    %1040 = vmatprep.subr.mxu0 0.0
    %1041 = vmatpush1.msra.mxu0 %v959
    %1042 = vmatprep.subr.mxu0 0.0
    %1043 = vmatpush1.msra.mxu0 %v960
    %1044 = vmatprep.subr.mxu0 0.0
    %1045 = vmatpush1.msra.mxu0 %v961
    %1046 = vmatprep.subr.mxu0 0.0
    %1047 = vmatpush1.msra.mxu0 %v962
    %1048 = vmatprep.subr.mxu0 0.0
    %1049 = vmatpush1.msra.mxu0 %v963
    %1050 = vmatprep.subr.mxu0 0.0
    %1051 = vmatpush1.msra.mxu0 %v964
    %1052 = vmatprep.subr.mxu0 0.0
    %1053 = vmatpush1.msra.mxu0 %v965
    %1054 = vmatprep.subr.mxu0 0.0
    %1055 = vmatpush1.msra.mxu0 %v966
    %1056 = vmatprep.subr.mxu0 0.0
    %1057 = vmatpush1.msra.mxu0 %v967
    %1058 = vmatprep.subr.mxu0 0.0
    %1059 = vmatpush1.msra.mxu0 %v968
    %1060 = vmatprep.subr.mxu0 0.0
    %1061 = vmatpush1.msra.mxu0 %v969
    %1062 = vmatprep.subr.mxu0 0.0
    %1063 = vmatpush1.msra.mxu0 %v970
    %1064 = vmatprep.subr.mxu0 0.0
    %1065 = vmatpush1.msra.mxu0 %v971
    %1066 = vmatprep.subr.mxu0 0.0
    %1067 = vmatpush1.msra.mxu0 %v972
    %1068 = vmatprep.subr.mxu0 0.0
    %1069 = vmatpush1.msra.mxu0 %v973
    %1070 = vmatprep.mubr.f32.mxu0 %v939
    %1071 = vmatmul.mubr.f32.gmra.mrb[0].mxu0 %v938
    %v1072 = vpop.f32.mrb[0].mxu0
    %v1073 = vadd.f32 0.0, %v1072
    %v1074 = vpop.f32.mrb[0].mxu0
    %1075 = vdwg.mxu0
    %1076 = vmatprep.subr.mxu0 0.0
    %1077 = vmatpush1.msra.mxu0 %v974
    %1078 = vmatprep.subr.mxu0 0.0
    %1079 = vmatpush1.msra.mxu0 %v975
    %1080 = vmatprep.subr.mxu0 0.0
    %1081 = vmatpush1.msra.mxu0 %v976
    %1082 = vmatprep.subr.mxu0 0.0
    %1083 = vmatpush1.msra.mxu0 %v977
    %1084 = vmatprep.subr.mxu0 0.0
    %1085 = vmatpush1.msra.mxu0 %v978
    %1086 = vmatprep.subr.mxu0 0.0
    %1087 = vmatpush1.msra.mxu0 %v979
    %1088 = vmatprep.subr.mxu0 0.0
    %1089 = vmatpush1.msra.mxu0 %v980
    %1090 = vmatprep.subr.mxu0 0.0
    %1091 = vmatpush1.msra.mxu0 %v981
    %1092 = vmatprep.subr.mxu0 0.0
    %1093 = vmatpush1.msra.mxu0 %v982
    %1094 = vmatprep.subr.mxu0 0.0
    %1095 = vmatpush1.msra.mxu0 %v983
    %1096 = vmatprep.subr.mxu0 0.0
    %1097 = vmatpush1.msra.mxu0 %v984
    %1098 = vmatprep.subr.mxu0 0.0
    %1099 = vmatpush1.msra.mxu0 %v985
    %1100 = vmatprep.subr.mxu0 0.0
    %1101 = vmatpush1.msra.mxu0 %v986
    %1102 = vmatprep.subr.mxu0 0.0
    %1103 = vmatpush1.msra.mxu0 %v987
    %1104 = vmatprep.subr.mxu0 0.0
    %1105 = vmatpush1.msra.mxu0 %v988
    %1106 = vmatprep.subr.mxu0 0.0
    %1107 = vmatpush1.msra.mxu0 %v989
    %1108 = vmatprep.subr.mxu0 0.0
    %1109 = vmatpush1.msra.mxu0 %v990
    %1110 = vmatprep.subr.mxu0 0.0
    %1111 = vmatpush1.msra.mxu0 %v991
    %1112 = vmatprep.subr.mxu0 0.0
    %1113 = vmatpush1.msra.mxu0 %v992
    %1114 = vmatprep.subr.mxu0 0.0
    %1115 = vmatpush1.msra.mxu0 %v993
    %1116 = vmatprep.subr.mxu0 0.0
    %1117 = vmatpush1.msra.mxu0 %v994
    %1118 = vmatprep.subr.mxu0 0.0
    %1119 = vmatpush1.msra.mxu0 %v995
    %1120 = vmatprep.subr.mxu0 0.0
    %1121 = vmatpush1.msra.mxu0 %v996
    %1122 = vmatprep.subr.mxu0 0.0
    %1123 = vmatpush1.msra.mxu0 %v997
    %1124 = vmatprep.subr.mxu0 0.0
    %1125 = vmatpush1.msra.mxu0 %v998
    %1126 = vmatprep.subr.mxu0 0.0
    %1127 = vmatpush1.msra.mxu0 %v999
    %1128 = vmatprep.subr.mxu0 0.0
    %1129 = vmatpush1.msra.mxu0 %v1000
    %1130 = vmatprep.subr.mxu0 0.0
    %1131 = vmatpush1.msra.mxu0 %v1001
    %1132 = vmatprep.subr.mxu0 0.0
    %1133 = vmatpush1.msra.mxu0 %v1002
    %1134 = vmatprep.subr.mxu0 0.0
    %1135 = vmatpush1.msra.mxu0 %v1003
    %1136 = vmatprep.subr.mxu0 0.0
    %1137 = vmatpush1.msra.mxu0 %v1004
    %1138 = vmatprep.subr.mxu0 0.0
    %1139 = vmatpush1.msra.mxu0 %v1005
    %1140 = vmatprep.mubr.f32.mxu0 %v941
    %1141 = vmatmul.mubr.f32.gmra.mrb[0].mxu0 %v940
    %v1142 = vpop.f32.mrb[0].mxu0
    %v1143 = vadd.f32 %v1073, %v1142
    %v1144 = vpop.f32.mrb[0].mxu0
    %1145 = vdwg.mxu0
    %v1146 = vmul.f32 %v1143, 0.17677669
    %vm1147 = vcmask 123904
    %v1148 = vsel %vm1147, %v1146, -inf
    %1149 = vmax.xlane.f32.xlu0 %v1148
    %v1150 = vpop.xlane.xlu0 %1149
    %v1151 = vsub.f32 %v1146, %v1150
    %v1152 = vmul.f32 %v1151, 1.442695
    %v1153 = vpow.pop %v1152
    %v1154 = vsel %vm1147, %v1153, 0.0
    %1155 = vadd.xlane.f32.xlu0 %v1154
    %v1156 = vpop.xlane.xlu0 %1155
    %v1157 = vrcp.pop %v1156
    %v1158 = vmul.f32 %v1153, %v1157
    %v1159 = vld [vmem:[%s14] sm:$0xff]
    %v1160 = vld [vmem:[%s14 + $0x8] sm:$0xff]
    %v1161 = vld [vmem:[%s14 + $0x10] sm:$0xff]
    %v1162 = vld [vmem:[%s14 + $0x18] sm:$0xff]
    %v1163 = vld [vmem:[%s14 + $0x20] sm:$0xff]
    %v1164 = vld [vmem:[%s14 + $0x28] sm:$0xff]
    %v1165 = vld [vmem:[%s14 + $0x30] sm:$0xff]
    %v1166 = vld [vmem:[%s14 + $0x38] sm:$0xff]
    %v1168 = vsel %vm179, %v1158, 0
    %1170 = vmatprep.subr.mxu0 %v1160
    %1171 = vmatpush1.msra.mxu0 %v1159
    %1172 = vmatprep.subr.mxu0 %v1164
    %1173 = vmatpush1.msra.mxu0 %v1163
    %1174 = vmatprep.subr.mxu0 0.0
    %1175 = vmatpush1.msra.mxu0 0.0
    %1176 = vmatprep.subr.mxu0 0.0
    %1177 = vmatpush1.msra.mxu0 0.0
    %1178 = vmatprep.subr.mxu0 0.0
    %1179 = vmatpush1.msra.mxu0 0.0
    %1180 = vmatprep.subr.mxu0 0.0
    %1181 = vmatpush1.msra.mxu0 0.0
    %1182 = vmatprep.subr.mxu0 0.0
    %1183 = vmatpush1.msra.mxu0 0.0
    %1184 = vmatprep.subr.mxu0 0.0
    %1185 = vmatpush1.msra.mxu0 0.0
    %1186 = vmatprep.subr.mxu0 0.0
    %1187 = vmatpush1.msra.mxu0 0.0
    %1188 = vmatprep.subr.mxu0 0.0
    %1189 = vmatpush1.msra.mxu0 0.0
    %1190 = vmatprep.subr.mxu0 0.0
    %1191 = vmatpush1.msra.mxu0 0.0
    %1192 = vmatprep.subr.mxu0 0.0
    %1193 = vmatpush1.msra.mxu0 0.0
    %1194 = vmatprep.subr.mxu0 0.0
    %1195 = vmatpush1.msra.mxu0 0.0
    %1196 = vmatprep.subr.mxu0 0.0
    %1197 = vmatpush1.msra.mxu0 0.0
    %1198 = vmatprep.subr.mxu0 0.0
    %1199 = vmatpush1.msra.mxu0 0.0
    %1200 = vmatprep.subr.mxu0 0.0
    %1201 = vmatpush1.msra.mxu0 0.0
    %1202 = vmatprep.subr.mxu0 0.0
    %1203 = vmatpush1.msra.mxu0 0.0
    %1204 = vmatprep.subr.mxu0 0.0
    %1205 = vmatpush1.msra.mxu0 0.0
    %1206 = vmatprep.subr.mxu0 0.0
    %1207 = vmatpush1.msra.mxu0 0.0
    %1208 = vmatprep.subr.mxu0 0.0
    %1209 = vmatpush1.msra.mxu0 0.0
    %1210 = vmatprep.subr.mxu0 0.0
    %1211 = vmatpush1.msra.mxu0 0.0
    %1212 = vmatprep.subr.mxu0 0.0
    %1213 = vmatpush1.msra.mxu0 0.0
    %1214 = vmatprep.subr.mxu0 0.0
    %1215 = vmatpush1.msra.mxu0 0.0
    %1216 = vmatprep.subr.mxu0 0.0
    %1217 = vmatpush1.msra.mxu0 0.0
    %1218 = vmatprep.subr.mxu0 0.0
    %1219 = vmatpush1.msra.mxu0 0.0
    %1220 = vmatprep.subr.mxu0 0.0
    %1221 = vmatpush1.msra.mxu0 0.0
    %1222 = vmatprep.subr.mxu0 0.0
    %1223 = vmatpush1.msra.mxu0 0.0
    %1224 = vmatprep.subr.mxu0 0.0
    %1225 = vmatpush1.msra.mxu0 0.0
    %1226 = vmatprep.subr.mxu0 0.0
    %1227 = vmatpush1.msra.mxu0 0.0
    %1228 = vmatprep.subr.mxu0 0.0
    %1229 = vmatpush1.msra.mxu0 0.0
    %1230 = vmatprep.subr.mxu0 0.0
    %1231 = vmatpush1.msra.mxu0 0.0
    %1232 = vmatprep.subr.mxu0 0.0
    %1233 = vmatpush1.msra.mxu0 0.0
    %1234 = vmatprep.mubr.f32.mxu0 0.0
    %1235 = vmatmul.mubr.f32.gmra.mrb[0].mxu0 %v1168
    %v1236 = vpop.f32.mrb[0].mxu0
    %v1237 = vadd.f32 0.0, %v1236
    %v1238 = vpop.f32.mrb[0].mxu0
    %v1239 = vadd.f32 0.0, %v1238
    %1240 = vdwg.mxu0
    %1241 = vmatprep.subr.mxu0 %v1162
    %1242 = vmatpush1.msra.mxu0 %v1161
    %1243 = vmatprep.subr.mxu0 %v1166
    %1244 = vmatpush1.msra.mxu0 %v1165
    %1245 = vmatprep.subr.mxu0 0.0
    %1246 = vmatpush1.msra.mxu0 0.0
    %1247 = vmatprep.subr.mxu0 0.0
    %1248 = vmatpush1.msra.mxu0 0.0
    %1249 = vmatprep.subr.mxu0 0.0
    %1250 = vmatpush1.msra.mxu0 0.0
    %1251 = vmatprep.subr.mxu0 0.0
    %1252 = vmatpush1.msra.mxu0 0.0
    %1253 = vmatprep.subr.mxu0 0.0
    %1254 = vmatpush1.msra.mxu0 0.0
    %1255 = vmatprep.subr.mxu0 0.0
    %1256 = vmatpush1.msra.mxu0 0.0
    %1257 = vmatprep.subr.mxu0 0.0
    %1258 = vmatpush1.msra.mxu0 0.0
    %1259 = vmatprep.subr.mxu0 0.0
    %1260 = vmatpush1.msra.mxu0 0.0
    %1261 = vmatprep.subr.mxu0 0.0
    %1262 = vmatpush1.msra.mxu0 0.0
    %1263 = vmatprep.subr.mxu0 0.0
    %1264 = vmatpush1.msra.mxu0 0.0
    %1265 = vmatprep.subr.mxu0 0.0
    %1266 = vmatpush1.msra.mxu0 0.0
    %1267 = vmatprep.subr.mxu0 0.0
    %1268 = vmatpush1.msra.mxu0 0.0
    %1269 = vmatprep.subr.mxu0 0.0
    %1270 = vmatpush1.msra.mxu0 0.0
    %1271 = vmatprep.subr.mxu0 0.0
    %1272 = vmatpush1.msra.mxu0 0.0
    %1273 = vmatprep.subr.mxu0 0.0
    %1274 = vmatpush1.msra.mxu0 0.0
    %1275 = vmatprep.subr.mxu0 0.0
    %1276 = vmatpush1.msra.mxu0 0.0
    %1277 = vmatprep.subr.mxu0 0.0
    %1278 = vmatpush1.msra.mxu0 0.0
    %1279 = vmatprep.subr.mxu0 0.0
    %1280 = vmatpush1.msra.mxu0 0.0
    %1281 = vmatprep.subr.mxu0 0.0
    %1282 = vmatpush1.msra.mxu0 0.0
    %1283 = vmatprep.subr.mxu0 0.0
    %1284 = vmatpush1.msra.mxu0 0.0
    %1285 = vmatprep.subr.mxu0 0.0
    %1286 = vmatpush1.msra.mxu0 0.0
    %1287 = vmatprep.subr.mxu0 0.0
    %1288 = vmatpush1.msra.mxu0 0.0
    %1289 = vmatprep.subr.mxu0 0.0
    %1290 = vmatpush1.msra.mxu0 0.0
    %1291 = vmatprep.subr.mxu0 0.0
    %1292 = vmatpush1.msra.mxu0 0.0
    %1293 = vmatprep.subr.mxu0 0.0
    %1294 = vmatpush1.msra.mxu0 0.0
    %1295 = vmatprep.subr.mxu0 0.0
    %1296 = vmatpush1.msra.mxu0 0.0
    %1297 = vmatprep.subr.mxu0 0.0
    %1298 = vmatpush1.msra.mxu0 0.0
    %1299 = vmatprep.subr.mxu0 0.0
    %1300 = vmatpush1.msra.mxu0 0.0
    %1301 = vmatprep.subr.mxu0 0.0
    %1302 = vmatpush1.msra.mxu0 0.0
    %1303 = vmatprep.subr.mxu0 0.0
    %1304 = vmatpush1.msra.mxu0 0.0
    %1305 = vmatprep.mubr.f32.mxu0 0.0
    %1306 = vmatmul.mubr.f32.gmra.mrb[0].mxu0 %v1168
    %v1307 = vpop.f32.mrb[0].mxu0
    %v1308 = vadd.f32 0.0, %v1307
    %v1309 = vpop.f32.mrb[0].mxu0
    %v1310 = vadd.f32 0.0, %v1309
    %1311 = vdwg.mxu0
    %v1312 = vmul.f32 %v1237, %v763
    %v1313 = vmul.f32 %v1239, %v765
    %v1314 = vmul.f32 %v1308, %v804
    %v1315 = vmul.f32 %v1310, %v806
    %v1316 = vpack.c.bf16 %v1312, %v1312
    %v1317 = vpack.c.bf16 %v1313, %v1313
    %v1318 = vpack.c.bf16 %v1314, %v1314
    %v1319 = vpack.c.bf16 %v1315, %v1315
    %v1320 = vld [vmem:[%s15] sm:$0xf]
    %v1321 = vld [vmem:[%s15 + $0x4] sm:$0xf]
    %v1322 = vld [vmem:[%s15 + $0x8] sm:$0xf]
    %v1323 = vld [vmem:[%s15 + $0xc] sm:$0xf]
    %v1324 = vld [vmem:[%s15 + $0x10] sm:$0xf]
    %v1325 = vld [vmem:[%s15 + $0x14] sm:$0xf]
    %v1326 = vld [vmem:[%s15 + $0x18] sm:$0xf]
    %v1327 = vld [vmem:[%s15 + $0x1c] sm:$0xf]
    %v1328 = vld [vmem:[%s15 + $0x20] sm:$0xf]
    %v1329 = vld [vmem:[%s15 + $0x24] sm:$0xf]
    %v1330 = vld [vmem:[%s15 + $0x28] sm:$0xf]
    %v1331 = vld [vmem:[%s15 + $0x2c] sm:$0xf]
    %v1332 = vld [vmem:[%s15 + $0x30] sm:$0xf]
    %v1333 = vld [vmem:[%s15 + $0x34] sm:$0xf]
    %v1334 = vld [vmem:[%s15 + $0x38] sm:$0xf]
    %v1335 = vld [vmem:[%s15 + $0x3c] sm:$0xf]
    %v1336 = vld [vmem:[%s15 + $0x40] sm:$0xf]
    %v1337 = vld [vmem:[%s15 + $0x44] sm:$0xf]
    %v1338 = vld [vmem:[%s15 + $0x48] sm:$0xf]
    %v1339 = vld [vmem:[%s15 + $0x4c] sm:$0xf]
    %v1340 = vld [vmem:[%s15 + $0x50] sm:$0xf]
    %v1341 = vld [vmem:[%s15 + $0x54] sm:$0xf]
    %v1342 = vld [vmem:[%s15 + $0x58] sm:$0xf]
    %v1343 = vld [vmem:[%s15 + $0x5c] sm:$0xf]
    %v1344 = vld [vmem:[%s15 + $0x60] sm:$0xf]
    %v1345 = vld [vmem:[%s15 + $0x64] sm:$0xf]
    %v1346 = vld [vmem:[%s15 + $0x68] sm:$0xf]
    %v1347 = vld [vmem:[%s15 + $0x6c] sm:$0xf]
    %v1348 = vld [vmem:[%s15 + $0x70] sm:$0xf]
    %v1349 = vld [vmem:[%s15 + $0x74] sm:$0xf]
    %v1350 = vld [vmem:[%s15 + $0x78] sm:$0xf]
    %v1351 = vld [vmem:[%s15 + $0x7c] sm:$0xf]
    %v1352 = vld [vmem:[%s15 + $0x80] sm:$0xf]
    %v1353 = vld [vmem:[%s15 + $0x84] sm:$0xf]
    %v1354 = vld [vmem:[%s15 + $0x88] sm:$0xf]
    %v1355 = vld [vmem:[%s15 + $0x8c] sm:$0xf]
    %v1356 = vld [vmem:[%s15 + $0x90] sm:$0xf]
    %v1357 = vld [vmem:[%s15 + $0x94] sm:$0xf]
    %v1358 = vld [vmem:[%s15 + $0x98] sm:$0xf]
    %v1359 = vld [vmem:[%s15 + $0x9c] sm:$0xf]
    %v1360 = vld [vmem:[%s15 + $0xa0] sm:$0xf]
    %v1361 = vld [vmem:[%s15 + $0xa4] sm:$0xf]
    %v1362 = vld [vmem:[%s15 + $0xa8] sm:$0xf]
    %v1363 = vld [vmem:[%s15 + $0xac] sm:$0xf]
    %v1364 = vld [vmem:[%s15 + $0xb0] sm:$0xf]
    %v1365 = vld [vmem:[%s15 + $0xb4] sm:$0xf]
    %v1366 = vld [vmem:[%s15 + $0xb8] sm:$0xf]
    %v1367 = vld [vmem:[%s15 + $0xbc] sm:$0xf]
    %v1368 = vld [vmem:[%s15 + $0xc0] sm:$0xf]
    %v1369 = vld [vmem:[%s15 + $0xc4] sm:$0xf]
    %v1370 = vld [vmem:[%s15 + $0xc8] sm:$0xf]
    %v1371 = vld [vmem:[%s15 + $0xcc] sm:$0xf]
    %v1372 = vld [vmem:[%s15 + $0xd0] sm:$0xf]
    %v1373 = vld [vmem:[%s15 + $0xd4] sm:$0xf]
    %v1374 = vld [vmem:[%s15 + $0xd8] sm:$0xf]
    %v1375 = vld [vmem:[%s15 + $0xdc] sm:$0xf]
    %v1376 = vld [vmem:[%s15 + $0xe0] sm:$0xf]
    %v1377 = vld [vmem:[%s15 + $0xe4] sm:$0xf]
    %v1378 = vld [vmem:[%s15 + $0xe8] sm:$0xf]
    %v1379 = vld [vmem:[%s15 + $0xec] sm:$0xf]
    %v1380 = vld [vmem:[%s15 + $0xf0] sm:$0xf]
    %v1381 = vld [vmem:[%s15 + $0xf4] sm:$0xf]
    %v1382 = vld [vmem:[%s15 + $0xf8] sm:$0xf]
    %v1383 = vld [vmem:[%s15 + $0xfc] sm:$0xf]
    %v1384 = vpack.c.bf16 %v553, %v553
    %v1385 = vld [vmem:[#allocation14] sm:$0xf]
    %v1386 = vld [vmem:[#allocation14 + $0x4] sm:$0xf]
    %v1387 = vld [vmem:[#allocation14 + $0x8] sm:$0xf]
    %v1388 = vld [vmem:[#allocation14 + $0xc] sm:$0xf]
    %v1389 = vld [vmem:[#allocation14 + $0x10] sm:$0xf]
    %v1390 = vld [vmem:[#allocation14 + $0x14] sm:$0xf]
    %v1391 = vld [vmem:[#allocation14 + $0x18] sm:$0xf]
    %v1392 = vld [vmem:[#allocation14 + $0x1c] sm:$0xf]
    %v1393 = vld [vmem:[#allocation14 + $0x20] sm:$0xf]
    %v1394 = vld [vmem:[#allocation14 + $0x24] sm:$0xf]
    %v1395 = vld [vmem:[#allocation14 + $0x28] sm:$0xf]
    %v1396 = vld [vmem:[#allocation14 + $0x2c] sm:$0xf]
    %v1397 = vld [vmem:[#allocation14 + $0x30] sm:$0xf]
    %v1398 = vld [vmem:[#allocation14 + $0x34] sm:$0xf]
    %v1399 = vld [vmem:[#allocation14 + $0x38] sm:$0xf]
    %v1400 = vld [vmem:[#allocation14 + $0x3c] sm:$0xf]
    %v1417 = vunpack.c.l.b16 %v1385
    %v1418 = vunpack.c.l.b16 %v1386
    %v1419 = vunpack.c.l.b16 %v1387
    %v1420 = vunpack.c.l.b16 %v1388
    %v1421 = vunpack.c.l.b16 %v1389
    %v1422 = vunpack.c.l.b16 %v1390
    %v1423 = vunpack.c.l.b16 %v1391
    %v1424 = vunpack.c.l.b16 %v1392
    %v1425 = vunpack.c.l.b16 %v1393
    %v1426 = vunpack.c.l.b16 %v1394
    %v1427 = vunpack.c.l.b16 %v1395
    %v1428 = vunpack.c.l.b16 %v1396
    %v1429 = vunpack.c.l.b16 %v1397
    %v1430 = vunpack.c.l.b16 %v1398
    %v1431 = vunpack.c.l.b16 %v1399
    %v1432 = vunpack.c.l.b16 %v1400
    %v1433 = vpack.c.b16 %v1418, %v1417
    %v1434 = vpack.c.b16 %v1420, %v1419
    %v1435 = vpack.c.b16 %v1422, %v1421
    %v1436 = vpack.c.b16 %v1424, %v1423
    %v1437 = vpack.c.b16 %v1426, %v1425
    %v1438 = vpack.c.b16 %v1428, %v1427
    %v1439 = vpack.c.b16 %v1430, %v1429
    %v1440 = vpack.c.b16 %v1432, %v1431
    %1449 = vmatprep.subr.bf16.mxu0 0
    %1450 = vmatpush1.bf16.msra.mxu0 %v1433
    %1451 = vmatprep.subr.bf16.mxu0 0
    %1452 = vmatpush1.bf16.msra.mxu0 %v1434
    %1453 = vmatprep.subr.bf16.mxu0 0
    %1454 = vmatpush1.bf16.msra.mxu0 %v1435
    %1455 = vmatprep.subr.bf16.mxu0 0
    %1456 = vmatpush1.bf16.msra.mxu0 %v1436
    %1457 = vmatprep.subr.bf16.mxu0 0
    %1458 = vmatpush1.bf16.msra.mxu0 %v1437
    %1459 = vmatprep.subr.bf16.mxu0 0
    %1460 = vmatpush1.bf16.msra.mxu0 %v1438
    %1461 = vmatprep.subr.bf16.mxu0 0
    %1462 = vmatpush1.bf16.msra.mxu0 %v1439
    %1463 = vmatprep.subr.bf16.mxu0 0
    %1464 = vmatpush1.bf16.msra.mxu0 %v1440
    %1465 = vmatprep.subr.bf16.mxu0 0
    %1466 = vmatpush1.bf16.msra.mxu0 0
    %1467 = vmatprep.subr.bf16.mxu0 0
    %1468 = vmatpush1.bf16.msra.mxu0 0
    %1469 = vmatprep.subr.bf16.mxu0 0
    %1470 = vmatpush1.bf16.msra.mxu0 0
    %1471 = vmatprep.subr.bf16.mxu0 0
    %1472 = vmatpush1.bf16.msra.mxu0 0
    %1473 = vmatprep.subr.bf16.mxu0 0
    %1474 = vmatpush1.bf16.msra.mxu0 0
    %1475 = vmatprep.subr.bf16.mxu0 0
    %1476 = vmatpush1.bf16.msra.mxu0 0
    %1477 = vmatprep.subr.bf16.mxu0 0
    %1478 = vmatpush1.bf16.msra.mxu0 0
    %1479 = vmatprep.subr.bf16.mxu0 0
    %1480 = vmatpush1.bf16.msra.mxu0 0
    %1481 = vmatprep.mubr.bf16.mxu0 0
    %1482 = vmatmul.mubr.bf16.gmra.mrb[0].mxu0 %v1384
    %v1483 = vpop.f32.mrb[0].mxu0
    %v1484 = vadd.f32 0.0, %v1483
    %v1485 = vpop.f32.mrb[0].mxu0
    %v1486 = vpop.f32.mrb[0].mxu0
    %v1487 = vpop.f32.mrb[0].mxu0
    %1488 = vdwg.mxu0
    %v1553 = vunpack.c.l.b16 %v1320
    %v1554 = vunpack.c.l.b16 %v1321
    %v1555 = vunpack.c.l.b16 %v1322
    %v1556 = vunpack.c.l.b16 %v1323
    %v1557 = vunpack.c.l.b16 %v1324
    %v1558 = vunpack.c.l.b16 %v1325
    %v1559 = vunpack.c.l.b16 %v1326
    %v1560 = vunpack.c.l.b16 %v1327
    %v1561 = vunpack.c.l.b16 %v1328
    %v1562 = vunpack.c.l.b16 %v1329
    %v1563 = vunpack.c.l.b16 %v1330
    %v1564 = vunpack.c.l.b16 %v1331
    %v1565 = vunpack.c.l.b16 %v1332
    %v1566 = vunpack.c.l.b16 %v1333
    %v1567 = vunpack.c.l.b16 %v1334
    %v1568 = vunpack.c.l.b16 %v1335
    %v1569 = vunpack.c.l.b16 %v1336
    %v1570 = vunpack.c.l.b16 %v1337
    %v1571 = vunpack.c.l.b16 %v1338
    %v1572 = vunpack.c.l.b16 %v1339
    %v1573 = vunpack.c.l.b16 %v1340
    %v1574 = vunpack.c.l.b16 %v1341
    %v1575 = vunpack.c.l.b16 %v1342
    %v1576 = vunpack.c.l.b16 %v1343
    %v1577 = vunpack.c.l.b16 %v1344
    %v1578 = vunpack.c.l.b16 %v1345
    %v1579 = vunpack.c.l.b16 %v1346
    %v1580 = vunpack.c.l.b16 %v1347
    %v1581 = vunpack.c.l.b16 %v1348
    %v1582 = vunpack.c.l.b16 %v1349
    %v1583 = vunpack.c.l.b16 %v1350
    %v1584 = vunpack.c.l.b16 %v1351
    %v1585 = vunpack.c.l.b16 %v1352
    %v1586 = vunpack.c.l.b16 %v1353
    %v1587 = vunpack.c.l.b16 %v1354
    %v1588 = vunpack.c.l.b16 %v1355
    %v1589 = vunpack.c.l.b16 %v1356
    %v1590 = vunpack.c.l.b16 %v1357
    %v1591 = vunpack.c.l.b16 %v1358
    %v1592 = vunpack.c.l.b16 %v1359
    %v1593 = vunpack.c.l.b16 %v1360
    %v1594 = vunpack.c.l.b16 %v1361
    %v1595 = vunpack.c.l.b16 %v1362
    %v1596 = vunpack.c.l.b16 %v1363
    %v1597 = vunpack.c.l.b16 %v1364
    %v1598 = vunpack.c.l.b16 %v1365
    %v1599 = vunpack.c.l.b16 %v1366
    %v1600 = vunpack.c.l.b16 %v1367
    %v1601 = vunpack.c.l.b16 %v1368
    %v1602 = vunpack.c.l.b16 %v1369
    %v1603 = vunpack.c.l.b16 %v1370
    %v1604 = vunpack.c.l.b16 %v1371
    %v1605 = vunpack.c.l.b16 %v1372
    %v1606 = vunpack.c.l.b16 %v1373
    %v1607 = vunpack.c.l.b16 %v1374
    %v1608 = vunpack.c.l.b16 %v1375
    %v1609 = vunpack.c.l.b16 %v1376
    %v1610 = vunpack.c.l.b16 %v1377
    %v1611 = vunpack.c.l.b16 %v1378
    %v1612 = vunpack.c.l.b16 %v1379
    %v1613 = vunpack.c.l.b16 %v1380
    %v1614 = vunpack.c.l.b16 %v1381
    %v1615 = vunpack.c.l.b16 %v1382
    %v1616 = vunpack.c.l.b16 %v1383
    %v1617 = vpack.c.b16 %v1554, %v1553
    %v1618 = vpack.c.b16 %v1556, %v1555
    %v1619 = vpack.c.b16 %v1558, %v1557
    %v1620 = vpack.c.b16 %v1560, %v1559
    %v1621 = vpack.c.b16 %v1562, %v1561
    %v1622 = vpack.c.b16 %v1564, %v1563
    %v1623 = vpack.c.b16 %v1566, %v1565
    %v1624 = vpack.c.b16 %v1568, %v1567
    %v1625 = vpack.c.b16 %v1570, %v1569
    %v1626 = vpack.c.b16 %v1572, %v1571
    %v1627 = vpack.c.b16 %v1574, %v1573
    %v1628 = vpack.c.b16 %v1576, %v1575
    %v1629 = vpack.c.b16 %v1578, %v1577
    %v1630 = vpack.c.b16 %v1580, %v1579
    %v1631 = vpack.c.b16 %v1582, %v1581
    %v1632 = vpack.c.b16 %v1584, %v1583
    %v1633 = vpack.c.b16 %v1586, %v1585
    %v1634 = vpack.c.b16 %v1588, %v1587
    %v1635 = vpack.c.b16 %v1590, %v1589
    %v1636 = vpack.c.b16 %v1592, %v1591
    %v1637 = vpack.c.b16 %v1594, %v1593
    %v1638 = vpack.c.b16 %v1596, %v1595
    %v1639 = vpack.c.b16 %v1598, %v1597
    %v1640 = vpack.c.b16 %v1600, %v1599
    %v1641 = vpack.c.b16 %v1602, %v1601
    %v1642 = vpack.c.b16 %v1604, %v1603
    %v1643 = vpack.c.b16 %v1606, %v1605
    %v1644 = vpack.c.b16 %v1608, %v1607
    %v1645 = vpack.c.b16 %v1610, %v1609
    %v1646 = vpack.c.b16 %v1612, %v1611
    %v1647 = vpack.c.b16 %v1614, %v1613
    %v1648 = vpack.c.b16 %v1616, %v1615
    %1681 = vmatprep.subr.bf16.mxu0 0
    %1682 = vmatpush1.bf16.msra.mxu0 %v1617
    %1683 = vmatprep.subr.bf16.mxu0 0
    %1684 = vmatpush1.bf16.msra.mxu0 %v1618
    %1685 = vmatprep.subr.bf16.mxu0 0
    %1686 = vmatpush1.bf16.msra.mxu0 %v1619
    %1687 = vmatprep.subr.bf16.mxu0 0
    %1688 = vmatpush1.bf16.msra.mxu0 %v1620
    %1689 = vmatprep.subr.bf16.mxu0 0
    %1690 = vmatpush1.bf16.msra.mxu0 %v1621
    %1691 = vmatprep.subr.bf16.mxu0 0
    %1692 = vmatpush1.bf16.msra.mxu0 %v1622
    %1693 = vmatprep.subr.bf16.mxu0 0
    %1694 = vmatpush1.bf16.msra.mxu0 %v1623
    %1695 = vmatprep.subr.bf16.mxu0 0
    %1696 = vmatpush1.bf16.msra.mxu0 %v1624
    %1697 = vmatprep.subr.bf16.mxu0 0
    %1698 = vmatpush1.bf16.msra.mxu0 %v1625
    %1699 = vmatprep.subr.bf16.mxu0 0
    %1700 = vmatpush1.bf16.msra.mxu0 %v1626
    %1701 = vmatprep.subr.bf16.mxu0 0
    %1702 = vmatpush1.bf16.msra.mxu0 %v1627
    %1703 = vmatprep.subr.bf16.mxu0 0
    %1704 = vmatpush1.bf16.msra.mxu0 %v1628
    %1705 = vmatprep.subr.bf16.mxu0 0
    %1706 = vmatpush1.bf16.msra.mxu0 %v1629
    %1707 = vmatprep.subr.bf16.mxu0 0
    %1708 = vmatpush1.bf16.msra.mxu0 %v1630
    %1709 = vmatprep.subr.bf16.mxu0 0
    %1710 = vmatpush1.bf16.msra.mxu0 %v1631
    %1711 = vmatprep.subr.bf16.mxu0 0
    %1712 = vmatpush1.bf16.msra.mxu0 %v1632
    %1713 = vmatprep.mubr.bf16.mxu0 %v1317
    %1714 = vmatmul.mubr.bf16.gmra.mrb[0].mxu0 %v1316
    %v1715 = vpop.f32.mrb[0].mxu0
    %v1716 = vadd.f32 %v1484, %v1715
    %v1717 = vpop.f32.mrb[0].mxu0
    %v1718 = vpop.f32.mrb[0].mxu0
    %v1719 = vpop.f32.mrb[0].mxu0
    %1720 = vdwg.mxu0
    %1721 = vmatprep.subr.bf16.mxu0 0
    %1722 = vmatpush1.bf16.msra.mxu0 %v1633
    %1723 = vmatprep.subr.bf16.mxu0 0
    %1724 = vmatpush1.bf16.msra.mxu0 %v1634
    %1725 = vmatprep.subr.bf16.mxu0 0
    %1726 = vmatpush1.bf16.msra.mxu0 %v1635
    %1727 = vmatprep.subr.bf16.mxu0 0
    %1728 = vmatpush1.bf16.msra.mxu0 %v1636
    %1729 = vmatprep.subr.bf16.mxu0 0
    %1730 = vmatpush1.bf16.msra.mxu0 %v1637
    %1731 = vmatprep.subr.bf16.mxu0 0
    %1732 = vmatpush1.bf16.msra.mxu0 %v1638
    %1733 = vmatprep.subr.bf16.mxu0 0
    %1734 = vmatpush1.bf16.msra.mxu0 %v1639
    %1735 = vmatprep.subr.bf16.mxu0 0
    %1736 = vmatpush1.bf16.msra.mxu0 %v1640
    %1737 = vmatprep.subr.bf16.mxu0 0
    %1738 = vmatpush1.bf16.msra.mxu0 %v1641
    %1739 = vmatprep.subr.bf16.mxu0 0
    %1740 = vmatpush1.bf16.msra.mxu0 %v1642
    %1741 = vmatprep.subr.bf16.mxu0 0
    %1742 = vmatpush1.bf16.msra.mxu0 %v1643
    %1743 = vmatprep.subr.bf16.mxu0 0
    %1744 = vmatpush1.bf16.msra.mxu0 %v1644
    %1745 = vmatprep.subr.bf16.mxu0 0
    %1746 = vmatpush1.bf16.msra.mxu0 %v1645
    %1747 = vmatprep.subr.bf16.mxu0 0
    %1748 = vmatpush1.bf16.msra.mxu0 %v1646
    %1749 = vmatprep.subr.bf16.mxu0 0
    %1750 = vmatpush1.bf16.msra.mxu0 %v1647
    %1751 = vmatprep.subr.bf16.mxu0 0
    %1752 = vmatpush1.bf16.msra.mxu0 %v1648
    %1753 = vmatprep.mubr.bf16.mxu0 %v1319
    %1754 = vmatmul.mubr.bf16.gmra.mrb[0].mxu0 %v1318
    %v1755 = vpop.f32.mrb[0].mxu0
    %v1756 = vadd.f32 %v1716, %v1755
    %v1757 = vpop.f32.mrb[0].mxu0
    %v1758 = vpop.f32.mrb[0].mxu0
    %v1759 = vpop.f32.mrb[0].mxu0
    %1760 = vdwg.mxu0
    %v1761 = vld [vmem:[%s17] sm:$0x1]
    %v1763 = vlaneseq
    %v1764 = vshrl.u32 %v1763, 7
    %v1765 = vsub.s32 0, %v1764
    %v1766 = vrot.slane %v1761, %v1765
    %v1768 = vadd.f32 %v1756, %v1766
    %1769 = vst [vmem:[#allocation16] sm:$0x3] %v1768
    // Predicated region
    $region106: #{tpu_custom_call.1} parent=1 // pred_check
      _
    $region107: #{tpu_custom_call.1} parent=1 // pred_check_branch
      %1771 = sbr.rel (0) target = $region109
    $region108: #{tpu_custom_call.1} parent=1 // pred_region
      %s1773 = ssub.s32 32, 32
      %1774 = vsyncadd [#allocation4], %s1773
      %s1776 = sshll.u32 [#allocation16], 4
      %s1777 = int_to_ptr.vmem [resolvable:$true] %s1776
      %1779 = dma.vmem_to_hbm [thread:$0]  %s1777, 32, %s18, [#allocation4]
    $region109: #{tpu_custom_call.1} parent=1 // pred_fallthru
      _
    // Predicated region
    $region110: #{tpu_custom_call.1} parent=1 // pred_check
      _
    $region111: #{tpu_custom_call.1} parent=1 // pred_check_branch
      %1781 = sbr.rel (0) target = $region113
    $region112: #{tpu_custom_call.1} parent=1 // pred_region
      %1782 = dma.done [#allocation4], 32
    $region113: #{tpu_custom_call.1} parent=1 // pred_fallthru
      _
    %1783 = vsyncpa [#allocation3], 1
    %1784 = vsyncpa [#allocation6], 1
    %1785 = vsyncpa [#allocation9], 1
    %1786 = vsyncpa [#allocation12], 1
    %1787 = vsyncpa [#allocation15], 1
    %1788 = vsyncpa [#allocation4], 1

</llo_original>
